<compile_context>
chip_gen: v5e
topology: v5e:2x2
jax: 0.10.0
libtpu: 0.0.40
codegen_flags: <defaults>
</compile_context>

<pallas_src>
import jax
import jax.numpy as jnp
from jax.experimental import pallas as pl
from jax.experimental.pallas import tpu as pltpu


# ----------------------------------------------------------------------------
# Kernel
# ----------------------------------------------------------------------------
def _decoder_kernel(ids_ref,                                   # SMEM (B,) int32 (scalar prefetch)
                    enc2d_ref, gat_ref, scat_ref, state_ref,   # VMEM activations / constants
                    emb_hbm_ref,                               # HBM (pl.ANY) embedding table
                    wa_enc_ref, wa_dec_ref, wa2_ref,           # attention weights
                    wih0e_ref, wih0c_ref, whh0_ref, bih0_ref, bhh0_ref,   # GRU layer 0 (per-gate)
                    wih1_ref, whh1_ref, bih1_ref, bhh1_ref,               # GRU layer 1 (per-gate)
                    wout_ref, bout_ref,                        # output projection (V-tiled)
                    out_ref, new_state_ref,                    # outputs
                    emb_buf, emb_sem, h1_buf):                 # scratch
    j = pl.program_id(0)          # V-tile index
    L = state_ref.shape[0]
    B = state_ref.shape[1]
    wdt = wa_enc_ref.dtype        # weight compute dtype (f32 or bf16)

    # ------------------------------------------------------------------
    # Attention + embedding gather + GRU: only on the first V tile.
    # Results needed by later tiles live in scratch / the resident output.
    # ------------------------------------------------------------------
    @pl.when(j == 0)
    def _attention_and_gru():
        # -- kick off per-row embedding gather (HBM -> VMEM) while attention runs --
        copies = []
        for b in range(B):
            cp = pltpu.make_async_copy(emb_hbm_ref.at[ids_ref[b]],
                                       emb_buf.at[b],
                                       emb_sem.at[b])
            cp.start()
            copies.append(cp)

        enc2d = enc2d_ref[...]                     # (S*B, H) f32, row r -> (s=r//B, b=r%B)
        dec = state_ref[L - 1]                     # (B, H) == state[-1]

        # -- attention scores: one 2-D MXU matmul over M = S*B --
        # split-weight form: [enc ; dec] @ Wa1.T == enc @ Wa_enc + dec @ Wa_dec
        e_enc = jnp.dot(enc2d.astype(wdt), wa_enc_ref[...],
                        preferred_element_type=jnp.float32)            # (S*B, A)
        e_dec = jnp.dot(dec.astype(wdt), wa_dec_ref[...],
                        preferred_element_type=jnp.float32)            # (B, A)
        # broadcast the per-batch dec term to every (s, b) row: row r gets batch r % B
        e_dec_rows = jnp.dot(scat_ref[...], e_dec,
                             preferred_element_type=jnp.float32)       # (S*B, A)
        e = jnp.tanh(e_enc + e_dec_rows)                               # (S*B, A)

        # -- score: VPU multiply + lane reduction (replaces the N=1 MXU matmul) --
        score = jnp.sum(e * wa2_ref[...], axis=-1, keepdims=True)      # (S*B, 1)

        # -- softmax over time (grouped by batch) --
        # softmax is shift-invariant, so a single global max is a valid stabilizer.
        p = jnp.exp(score - jnp.max(score))                            # (S*B, 1)
        gat = gat_ref[...]                                             # (B, S*B) 0/1 gather
        denom = jnp.dot(gat, p, preferred_element_type=jnp.float32)    # (B, 1)
        # context numerator: ONE matmul back against enc (sum over time per batch)
        num = jnp.dot(gat, p * enc2d, preferred_element_type=jnp.float32)   # (B, H)
        c = num / denom                                                # (B, H) context

        # -- wait for the gathered embedding rows --
        for cp in copies:
            cp.wait()
        emb = emb_buf[...]                                             # (B, E) in wdt

        c_w = c.astype(wdt)
        h_prev0 = state_ref[0]
        h_prev1 = state_ref[1]
        h_prev0_w = h_prev0.astype(wdt)
        h_prev1_w = h_prev1.astype(wdt)

        def dotw(x, w):
            return jnp.dot(x, w, preferred_element_type=jnp.float32)

        # -- GRU layer 0 (per-gate weights; no concat, no lane-misaligned gate slices)
        # PyTorch gate order: 0=r, 1=z, 2=n
        def gi0(g):   # input-side gate pre-activation: emb @ W_e + c @ W_c + b_ih
            return dotw(emb, wih0e_ref[g]) + dotw(c_w, wih0c_ref[g]) + bih0_ref[g]

        def gh0(g):   # hidden-side gate pre-activation: h @ W_hh + b_hh
            return dotw(h_prev0_w, whh0_ref[g]) + bhh0_ref[g]

        r0 = jax.nn.sigmoid(gi0(0) + gh0(0))
        z0 = jax.nn.sigmoid(gi0(1) + gh0(1))
        n0 = jnp.tanh(gi0(2) + r0 * gh0(2))
        h0 = (1.0 - z0) * n0 + z0 * h_prev0

        # -- GRU layer 1 --
        h0_w = h0.astype(wdt)

        def gi1(g):
            return dotw(h0_w, wih1_ref[g]) + bih1_ref[g]

        def gh1(g):
            return dotw(h_prev1_w, whh1_ref[g]) + bhh1_ref[g]

        r1 = jax.nn.sigmoid(gi1(0) + gh1(0))
        z1 = jax.nn.sigmoid(gi1(1) + gh1(1))
        n1 = jnp.tanh(gi1(2) + r1 * gh1(2))
        h1 = (1.0 - z1) * n1 + z1 * h_prev1

        new_state_ref[0] = h0
        new_state_ref[1] = h1
        # cache h1 already in the MXU weight dtype so the per-tile projection
        # does not re-cast it on every V tile
        h1_buf[...] = h1.astype(h1_buf.dtype)

    # ------------------------------------------------------------------
    # Output projection for this V tile (runs on every grid step).
    # ------------------------------------------------------------------
    out_ref[...] = (jnp.dot(h1_buf[...], wout_ref[...],
                            preferred_element_type=jnp.float32)
                    + bout_ref[...])


# ----------------------------------------------------------------------------
# Wrapper
# ----------------------------------------------------------------------------
def _resident_spec(shape):
    # Whole-array block, constant block index -> stays resident across V tiles.
    return pl.BlockSpec(shape, lambda *_: (0,) * len(shape))


def _choose_tile_v(v):
    # Small vocab: one full-width tile.  Large vocab: 2048-lane tiles (lane-dense
    # unmasked stores, double-buffered weight streaming, fits v7x 64 MiB VMEM).
    return v if v <= 2048 else 2048


def decoder_forward(cur_input, state, enc_states, p,
                    *, weight_dtype=jnp.float32, tile_v=None):
    """Pallas version of Decoder.forward. Returns (logits, new_state)."""
    S, B, H = enc_states.shape
    V, E = p['embedding'].shape
    L = state.shape[0]
    A = p['wa1'].shape[0]
    assert L == 2, "kernel is specialized for num_layers=2"

    f32 = jnp.float32
    wdt = weight_dtype

    if tile_v is None:
        tile_v = _choose_tile_v(V)
    nv = pl.cdiv(V, tile_v)
    v_pad = nv * tile_v                                       # pad V so every tile is full

    ids = cur_input.astype(jnp.int32).reshape(B)

    # --- wrapper-side layout plumbing (XLA): flatten enc for one big MXU matmul ---
    enc2d = enc_states.astype(f32).reshape(S * B, H)          # row r -> (s=r//B, b=r%B)
    row_b = jnp.arange(S * B) % B
    b_gather = (jnp.arange(B)[:, None] == row_b[None, :]).astype(f32)   # (B, S*B)
    b_scatter = b_gather.T                                              # (S*B, B)

    # --- attention weights: Linear(2H -> A, no bias); split [enc ; dec] halves ---
    wa_enc = p['wa1'][:, :H].T.astype(wdt)                    # (H, A)
    wa_dec = p['wa1'][:, H:].T.astype(wdt)                    # (H, A)
    wa2 = p['wa2'].reshape(1, A).astype(f32)                  # (1, A) row for VPU reduce

    # --- GRU weights: split per gate (r, z, n) and pre-transpose to x @ W form ---
    def gate_stack(w):            # (3H, X) -> (3, X, H)
        return jnp.transpose(w.reshape(3, H, w.shape[1]), (0, 2, 1)).astype(wdt)

    wih0_full = p['wih0'].reshape(3, H, E + H)                # torch (3H, E+H)
    wih0_e = jnp.transpose(wih0_full[:, :, :E], (0, 2, 1)).astype(wdt)   # (3, E, H)
    wih0_c = jnp.transpose(wih0_full[:, :, E:], (0, 2, 1)).astype(wdt)   # (3, H, H)
    whh0 = gate_stack(p['whh0'])                              # (3, H, H)
    bih0 = p['bih0'].reshape(3, 1, H).astype(f32)
    bhh0 = p['bhh0'].reshape(3, 1, H).astype(f32)

    wih1 = gate_stack(p['wih1'])                              # (3, H, H)
    whh1 = gate_stack(p['whh1'])                              # (3, H, H)
    bih1 = p['bih1'].reshape(3, 1, H).astype(f32)
    bhh1 = p['bhh1'].reshape(3, 1, H).astype(f32)

    wout = p['wout'].T.astype(wdt)                            # (H, V)
    bout = p['bout'].reshape(1, V).astype(f32)
    if v_pad != V:
        wout = jnp.pad(wout, ((0, 0), (0, v_pad - V)))
        bout = jnp.pad(bout, ((0, 0), (0, v_pad - V)))

    emb_tbl = p['embedding'].astype(wdt)                      # stays in HBM; rows DMA'd

    inputs = (ids,
              enc2d, b_gather, b_scatter, state.astype(f32),
              emb_tbl,
              wa_enc, wa_dec, wa2,
              wih0_e, wih0_c, whh0, bih0, bhh0,
              wih1, whh1, bih1, bhh1,
              wout, bout)

    in_specs = [
        _resident_spec(enc2d.shape),
        _resident_spec(b_gather.shape),
        _resident_spec(b_scatter.shape),
        _resident_spec(state.shape),
        pl.BlockSpec(memory_space=pl.ANY),                    # embedding table in HBM
        _resident_spec(wa_enc.shape),
        _resident_spec(wa_dec.shape),
        _resident_spec(wa2.shape),
        _resident_spec(wih0_e.shape),
        _resident_spec(wih0_c.shape),
        _resident_spec(whh0.shape),
        _resident_spec(bih0.shape),
        _resident_spec(bhh0.shape),
        _resident_spec(wih1.shape),
        _resident_spec(whh1.shape),
        _resident_spec(bih1.shape),
        _resident_spec(bhh1.shape),
        pl.BlockSpec((H, tile_v), lambda j, ids: (0, j)),     # V-tiled wout
        pl.BlockSpec((1, tile_v), lambda j, ids: (0, j)),     # V-tiled bout
    ]

    out_specs = [
        pl.BlockSpec((B, tile_v), lambda j, ids: (0, j)),     # V-tiled logits
        pl.BlockSpec((L, B, H), lambda j, ids: (0, 0, 0)),    # resident new_state
    ]

    out_shape = (jax.ShapeDtypeStruct((B, v_pad), f32),
                 jax.ShapeDtypeStruct((L, B, H), f32))

    grid_spec = pltpu.PrefetchScalarGridSpec(
        num_scalar_prefetch=1,
        grid=(nv,),
        in_specs=in_specs,
        out_specs=out_specs,
        scratch_shapes=[
            pltpu.VMEM((B, E), wdt),            # gathered embedding rows
            pltpu.SemaphoreType.DMA((B,)),      # per-row gather semaphores
            pltpu.VMEM((B, H), wdt),            # h1 kept across V tiles (weight dtype)
        ],
    )

    logits, new_state = pl.pallas_call(
        _decoder_kernel,
        grid_spec=grid_spec,
        out_shape=out_shape,
        compiler_params=pltpu.CompilerParams(
            dimension_semantics=("arbitrary",),     # scratch / new_state carry across V tiles
            vmem_limit_bytes=32 * 1024 * 1024,
        ),
    )(*inputs)

    if v_pad != V:
        logits = logits[:, :V]
    return logits, new_state


# ----------------------------------------------------------------------------
# Pure-JAX reference (mirrors PyTorch semantics) for correctness checking.
# ----------------------------------------------------------------------------
def decoder_reference(cur_input, state, enc_states, p):
    S, B, H = enc_states.shape
    dec = state[-1]
    dec_b = jnp.broadcast_to(dec[None], enc_states.shape)
    feats = jnp.concatenate([enc_states, dec_b], axis=2)               # (S,B,2H)
    e = jnp.tanh(feats @ p['wa1'].T) @ p['wa2'].T                      # (S,B,1)
    alpha = jax.nn.softmax(e, axis=0)
    c = jnp.sum(alpha * enc_states, axis=0)                            # (B,H)
    emb = p['embedding'][cur_input]                                    # (B,E)
    x = jnp.concatenate([emb, c], axis=1)

    def cell(x_in, h, wih, whh, bih, bhh):
        gi = x_in @ wih.T + bih
        gh = h @ whh.T + bhh
        r = jax.nn.sigmoid(gi[:, :H] + gh[:, :H])
        z = jax.nn.sigmoid(gi[:, H:2 * H] + gh[:, H:2 * H])
        n = jnp.tanh(gi[:, 2 * H:] + r * gh[:, 2 * H:])
        return (1.0 - z) * n + z * h

    h0 = cell(x, state[0], p['wih0'], p['whh0'], p['bih0'], p['bhh0'])
    h1 = cell(h0, state[1], p['wih1'], p['whh1'], p['bih1'], p['bhh1'])
    out = h1 @ p['wout'].T + p['bout']
    return out, jnp.stack([h0, h1])


if __name__ == "__main__":
    # Small shapes consistent with the module.
    vocab_size, embed_size, num_hiddens = 20, 16, 32
    num_layers, attention_size = 2, 10
    seq_len, batch = 8, 2
    H, E, V = num_hiddens, embed_size, vocab_size

    key = jax.random.PRNGKey(0)
    ks = jax.random.split(key, 16)

    def rnd(k, shape, scale=0.1):
        return (scale * jax.random.normal(k, shape)).astype(jnp.float32)

    params = {
        'embedding': rnd(ks[0], (V, E)),
        'wa1': rnd(ks[1], (attention_size, 2 * H)),      # Linear(2H -> A), no bias
        'wa2': rnd(ks[2], (1, attention_size)),          # Linear(A -> 1),  no bias
        'wih0': rnd(ks[3], (3 * H, H + E)),              # GRU layer 0
        'whh0': rnd(ks[4], (3 * H, H)),
        'bih0': rnd(ks[5], (3 * H,)),
        'bhh0': rnd(ks[6], (3 * H,)),
        'wih1': rnd(ks[7], (3 * H, H)),                  # GRU layer 1
        'whh1': rnd(ks[8], (3 * H, H)),
        'bih1': rnd(ks[9], (3 * H,)),
        'bhh1': rnd(ks[10], (3 * H,)),
        'wout': rnd(ks[11], (V, H)),                     # Linear(H -> V)
        'bout': rnd(ks[12], (V,)),
    }

    cur_input = jax.random.randint(ks[13], (batch,), 0, V, dtype=jnp.int32)
    state = rnd(ks[14], (num_layers, batch, H), scale=0.5)
    enc_states = rnd(ks[15], (seq_len, batch, H), scale=0.5)

    ref_out, ref_state = decoder_reference(cur_input, state, enc_states, params)

    # --- f32 weights: exact-semantics check ---
    out, new_state = decoder_forward(cur_input, state, enc_states, params,
                                     weight_dtype=jnp.float32)
    out = jax.block_until_ready(out)
    new_state = jax.block_until_ready(new_state)
    assert out.shape == (batch, V) and new_state.shape == (num_layers, batch, H)
    assert jnp.allclose(out, ref_out, atol=2e-4, rtol=2e-4)
    assert jnp.allclose(new_state, ref_state, atol=2e-4, rtol=2e-4)

    # --- bf16 weight streaming (v5e/v6e/v7x HBM-BW optimization): relaxed check ---
    out_bf, state_bf = decoder_forward(cur_input, state, enc_states, params,
                                       weight_dtype=jnp.bfloat16)
    out_bf = jax.block_until_ready(out_bf)
    state_bf = jax.block_until_ready(state_bf)
    assert jnp.allclose(out_bf, ref_out, atol=2e-2, rtol=2e-2)
    assert jnp.allclose(state_bf, ref_state, atol=2e-2, rtol=2e-2)

    print("KERNEL_OK")
</pallas_src>

<mosaic_0001>
module attributes {stable_mosaic.version = 11 : i64} {
  func.func @_decoder_kernel(%arg0: i32, %arg1: memref<2xi32, #tpu.memory_space<smem>>, %arg2: memref<16x32xf32, #tpu.memory_space<vmem>>, %arg3: memref<2x16xf32, #tpu.memory_space<vmem>>, %arg4: memref<16x2xf32, #tpu.memory_space<vmem>>, %arg5: memref<2x2x32xf32, #tpu.memory_space<vmem>>, %arg6: memref<20x16xf32, #tpu.memory_space<any>>, %arg7: memref<32x10xf32, #tpu.memory_space<vmem>>, %arg8: memref<32x10xf32, #tpu.memory_space<vmem>>, %arg9: memref<1x10xf32, #tpu.memory_space<vmem>>, %arg10: memref<3x16x32xf32, #tpu.memory_space<vmem>>, %arg11: memref<3x32x32xf32, #tpu.memory_space<vmem>>, %arg12: memref<3x32x32xf32, #tpu.memory_space<vmem>>, %arg13: memref<3x1x32xf32, #tpu.memory_space<vmem>>, %arg14: memref<3x1x32xf32, #tpu.memory_space<vmem>>, %arg15: memref<3x32x32xf32, #tpu.memory_space<vmem>>, %arg16: memref<3x32x32xf32, #tpu.memory_space<vmem>>, %arg17: memref<3x1x32xf32, #tpu.memory_space<vmem>>, %arg18: memref<3x1x32xf32, #tpu.memory_space<vmem>>, %arg19: memref<32x20xf32, #tpu.memory_space<vmem>>, %arg20: memref<1x20xf32, #tpu.memory_space<vmem>>, %arg21: memref<2x20xf32, #tpu.memory_space<vmem>>, %arg22: memref<2x2x32xf32, #tpu.memory_space<vmem>>, %arg23: memref<2x16xf32, #tpu.memory_space<vmem>>, %arg24: memref<2x!tpu.dma_semaphore, #tpu.memory_space<semaphore_mem>>, %arg25: memref<2x32xf32, #tpu.memory_space<vmem>>) attributes {dimension_semantics = [#tpu.dimension_semantics<arbitrary>], iteration_bounds = array<i64: 1>, scalar_prefetch = 1 : i64, scratch_operands = 3 : i64, tpu.core_type = #tpu.core_type<tc>, window_params = [{pipeline_mode = #tpu.pipeline_mode<synchronous>, transform_indices = @transform_0, window_bounds = array<i64: 16, 32>}, {pipeline_mode = #tpu.pipeline_mode<synchronous>, transform_indices = @transform_1, window_bounds = array<i64: 2, 16>}, {pipeline_mode = #tpu.pipeline_mode<synchronous>, transform_indices = @transform_2, window_bounds = array<i64: 16, 2>}, {pipeline_mode = #tpu.pipeline_mode<synchronous>, transform_indices = @transform_3, window_bounds = array<i64: 2, 2, 32>}, {}, {pipeline_mode = #tpu.pipeline_mode<synchronous>, transform_indices = @transform_5, window_bounds = array<i64: 32, 10>}, {pipeline_mode = #tpu.pipeline_mode<synchronous>, transform_indices = @transform_6, window_bounds = array<i64: 32, 10>}, {pipeline_mode = #tpu.pipeline_mode<synchronous>, transform_indices = @transform_7, window_bounds = array<i64: 1, 10>}, {pipeline_mode = #tpu.pipeline_mode<synchronous>, transform_indices = @transform_8, window_bounds = array<i64: 3, 16, 32>}, {pipeline_mode = #tpu.pipeline_mode<synchronous>, transform_indices = @transform_9, window_bounds = array<i64: 3, 32, 32>}, {pipeline_mode = #tpu.pipeline_mode<synchronous>, transform_indices = @transform_10, window_bounds = array<i64: 3, 32, 32>}, {pipeline_mode = #tpu.pipeline_mode<synchronous>, transform_indices = @transform_11, window_bounds = array<i64: 3, 1, 32>}, {pipeline_mode = #tpu.pipeline_mode<synchronous>, transform_indices = @transform_12, window_bounds = array<i64: 3, 1, 32>}, {pipeline_mode = #tpu.pipeline_mode<synchronous>, transform_indices = @transform_13, window_bounds = array<i64: 3, 32, 32>}, {pipeline_mode = #tpu.pipeline_mode<synchronous>, transform_indices = @transform_14, window_bounds = array<i64: 3, 32, 32>}, {pipeline_mode = #tpu.pipeline_mode<synchronous>, transform_indices = @transform_15, window_bounds = array<i64: 3, 1, 32>}, {pipeline_mode = #tpu.pipeline_mode<synchronous>, transform_indices = @transform_16, window_bounds = array<i64: 3, 1, 32>}, {transform_indices = @transform_17, window_bounds = array<i64: 32, 20>}, {transform_indices = @transform_18, window_bounds = array<i64: 1, 20>}, {transform_indices = @transform_19, window_bounds = array<i64: 2, 20>}, {pipeline_mode = #tpu.pipeline_mode<synchronous>, transform_indices = @transform_20, window_bounds = array<i64: 2, 2, 32>}]} {
    %c0_i32 = arith.constant 0 : i32
    %0 = arith.cmpi eq, %arg0, %c0_i32 : i32
    %1 = arith.extui %0 : i1 to i32
    %c0_i32_0 = arith.constant 0 : i32
    %2 = arith.cmpi ne, %1, %c0_i32_0 : i32
    scf.if %2 {
      %c0_8 = arith.constant 0 : index
      %10 = memref.load %arg1[%c0_8] : memref<2xi32, #tpu.memory_space<smem>>
      %c0_i32_9 = arith.constant 0 : i32
      %c0_i32_10 = arith.constant 0 : i32
      %c0_i32_11 = arith.constant 0 : i32
      %11 = tpu.memref_slice %arg6[%10, %c0_i32_11] : memref<20x16xf32, #tpu.memory_space<any>> -> memref<1x16xf32, #tpu.memory_space<any>>
      %12 = tpu.memref_squeeze %11 : memref<1x16xf32, #tpu.memory_space<any>> -> memref<16xf32, #tpu.memory_space<any>>
      %c0_i32_12 = arith.constant 0 : i32
      %13 = tpu.memref_slice %arg23[%c0_i32_9, %c0_i32_12] : memref<2x16xf32, #tpu.memory_space<vmem>> -> memref<1x16xf32, #tpu.memory_space<vmem>>
      %14 = tpu.memref_squeeze %13 : memref<1x16xf32, #tpu.memory_space<vmem>> -> memref<16xf32, #tpu.memory_space<vmem>>
      %15 = tpu.memref_slice %arg24[%c0_i32_10] : memref<2x!tpu.dma_semaphore, #tpu.memory_space<semaphore_mem>> -> memref<1x!tpu.dma_semaphore, #tpu.memory_space<semaphore_mem>>
      %16 = tpu.memref_squeeze %15 : memref<1x!tpu.dma_semaphore, #tpu.memory_space<semaphore_mem>> -> memref<!tpu.dma_semaphore, #tpu.memory_space<semaphore_mem>>
      tpu.enqueue_dma source(%12 : memref<16xf32, #tpu.memory_space<any>>) target(%14 : memref<16xf32, #tpu.memory_space<vmem>>) target_semaphore(%16 : memref<!tpu.dma_semaphore, #tpu.memory_space<semaphore_mem>>)
      %c1 = arith.constant 1 : index
      %17 = memref.load %arg1[%c1] : memref<2xi32, #tpu.memory_space<smem>>
      %c1_i32 = arith.constant 1 : i32
      %c1_i32_13 = arith.constant 1 : i32
      %c0_i32_14 = arith.constant 0 : i32
      %18 = tpu.memref_slice %arg6[%17, %c0_i32_14] : memref<20x16xf32, #tpu.memory_space<any>> -> memref<1x16xf32, #tpu.memory_space<any>>
      %19 = tpu.memref_squeeze %18 : memref<1x16xf32, #tpu.memory_space<any>> -> memref<16xf32, #tpu.memory_space<any>>
      %c0_i32_15 = arith.constant 0 : i32
      %20 = tpu.memref_slice %arg23[%c1_i32, %c0_i32_15] : memref<2x16xf32, #tpu.memory_space<vmem>> -> memref<1x16xf32, #tpu.memory_space<vmem>>
      %21 = tpu.memref_squeeze %20 : memref<1x16xf32, #tpu.memory_space<vmem>> -> memref<16xf32, #tpu.memory_space<vmem>>
      %22 = tpu.memref_slice %arg24[%c1_i32_13] : memref<2x!tpu.dma_semaphore, #tpu.memory_space<semaphore_mem>> -> memref<1x!tpu.dma_semaphore, #tpu.memory_space<semaphore_mem>>
      %23 = tpu.memref_squeeze %22 : memref<1x!tpu.dma_semaphore, #tpu.memory_space<semaphore_mem>> -> memref<!tpu.dma_semaphore, #tpu.memory_space<semaphore_mem>>
      tpu.enqueue_dma source(%19 : memref<16xf32, #tpu.memory_space<any>>) target(%21 : memref<16xf32, #tpu.memory_space<vmem>>) target_semaphore(%23 : memref<!tpu.dma_semaphore, #tpu.memory_space<semaphore_mem>>)
      %c0_16 = arith.constant 0 : index
      %c0_17 = arith.constant 0 : index
      %24 = vector.load %arg2[%c0_16, %c0_17] : memref<16x32xf32, #tpu.memory_space<vmem>>, vector<16x32xf32>
      %c1_18 = arith.constant 1 : index
      %c0_19 = arith.constant 0 : index
      %c0_20 = arith.constant 0 : index
      %25 = vector.load %arg5[%c1_18, %c0_19, %c0_20] : memref<2x2x32xf32, #tpu.memory_space<vmem>>, vector<1x2x32xf32>
      %26 = vector.shape_cast %25 : vector<1x2x32xf32> to vector<2x32xf32>
      %c0_21 = arith.constant 0 : index
      %c0_22 = arith.constant 0 : index
      %27 = vector.load %arg7[%c0_21, %c0_22] : memref<32x10xf32, #tpu.memory_space<vmem>>, vector<32x10xf32>
      %cst_23 = arith.constant dense<0.000000e+00> : vector<16x10xf32>
      %28 = tpu.matmul %24, %27, %cst_23 {dimension_numbers = #tpu.dot_dimension_numbers<[1], [0], [0], [1], [0, 0, 1, 1], [], []>} : vector<16x32xf32>, vector<32x10xf32>, vector<16x10xf32> -> vector<16x10xf32>
      %c0_24 = arith.constant 0 : index
      %c0_25 = arith.constant 0 : index
      %29 = vector.load %arg8[%c0_24, %c0_25] : memref<32x10xf32, #tpu.memory_space<vmem>>, vector<32x10xf32>
      %cst_26 = arith.constant dense<0.000000e+00> : vector<2x10xf32>
      %30 = tpu.matmul %26, %29, %cst_26 {dimension_numbers = #tpu.dot_dimension_numbers<[1], [0], [0], [1], [0, 0, 1, 1], [], []>} : vector<2x32xf32>, vector<32x10xf32>, vector<2x10xf32> -> vector<2x10xf32>
      %c0_27 = arith.constant 0 : index
      %c0_28 = arith.constant 0 : index
      %31 = vector.load %arg4[%c0_27, %c0_28] : memref<16x2xf32, #tpu.memory_space<vmem>>, vector<16x2xf32>
      %cst_29 = arith.constant dense<0.000000e+00> : vector<16x10xf32>
      %32 = tpu.matmul %31, %30, %cst_29 {dimension_numbers = #tpu.dot_dimension_numbers<[1], [0], [0], [1], [0, 0, 1, 1], [], []>} : vector<16x2xf32>, vector<2x10xf32>, vector<16x10xf32> -> vector<16x10xf32>
      %33 = arith.addf %28, %32 : vector<16x10xf32>
      %34 = math.tanh %33 : vector<16x10xf32>
      %c0_30 = arith.constant 0 : index
      %c0_31 = arith.constant 0 : index
      %35 = vector.load %arg9[%c0_30, %c0_31] : memref<1x10xf32, #tpu.memory_space<vmem>>, vector<1x10xf32>
      %36 = vector.broadcast %35 : vector<1x10xf32> to vector<16x10xf32>
      %37 = arith.mulf %34, %36 : vector<16x10xf32>
      %cst_32 = arith.constant dense<0.000000e+00> : vector<16xf32>
      %38 = vector.multi_reduction <add>, %37, %cst_32 [1] : vector<16x10xf32> to vector<16xf32>
      %39 = vector.shape_cast %38 : vector<16xf32> to vector<16x1xf32>
      %40 = vector.shape_cast %39 : vector<16x1xf32> to vector<1x16x1xf32>
      %cst_33 = arith.constant dense<0xFF800000> : vector<1xf32>
      %41 = vector.multi_reduction <maximumf>, %40, %cst_33 [1, 2] : vector<1x16x1xf32> to vector<1xf32>
      %42 = vector.shape_cast %41 : vector<1xf32> to vector<1x1x1xf32>
      %43 = vector.extract %42[0, 0, 0] : f32 from vector<1x1x1xf32>
      %44 = vector.broadcast %43 : f32 to vector<16x1xf32>
      %45 = arith.subf %39, %44 : vector<16x1xf32>
      %46 = math.exp %45 : vector<16x1xf32>
      %c0_34 = arith.constant 0 : index
      %c0_35 = arith.constant 0 : index
      %47 = vector.load %arg3[%c0_34, %c0_35] : memref<2x16xf32, #tpu.memory_space<vmem>>, vector<2x16xf32>
      %cst_36 = arith.constant dense<0.000000e+00> : vector<2x1xf32>
      %48 = tpu.matmul %47, %46, %cst_36 {dimension_numbers = #tpu.dot_dimension_numbers<[1], [0], [0], [1], [0, 0, 1, 1], [], []>} : vector<2x16xf32>, vector<16x1xf32>, vector<2x1xf32> -> vector<2x1xf32>
      %49 = vector.broadcast %46 : vector<16x1xf32> to vector<16x32xf32>
      %50 = arith.mulf %49, %24 : vector<16x32xf32>
      %cst_37 = arith.constant dense<0.000000e+00> : vector<2x32xf32>
      %51 = tpu.matmul %47, %50, %cst_37 {dimension_numbers = #tpu.dot_dimension_numbers<[1], [0], [0], [1], [0, 0, 1, 1], [], []>} : vector<2x16xf32>, vector<16x32xf32>, vector<2x32xf32> -> vector<2x32xf32>
      %52 = vector.broadcast %48 : vector<2x1xf32> to vector<2x32xf32>
      %53 = arith.divf %51, %52 : vector<2x32xf32>
      %c0_i32_38 = arith.constant 0 : i32
      %c0_i32_39 = arith.constant 0 : i32
      %c0_i32_40 = arith.constant 0 : i32
      %54 = tpu.memref_slice %arg6[%10, %c0_i32_40] : memref<20x16xf32, #tpu.memory_space<any>> -> memref<1x16xf32, #tpu.memory_space<any>>
      %55 = tpu.memref_squeeze %54 : memref<1x16xf32, #tpu.memory_space<any>> -> memref<16xf32, #tpu.memory_space<any>>
      %c0_i32_41 = arith.constant 0 : i32
      %56 = tpu.memref_slice %arg23[%c0_i32_38, %c0_i32_41] : memref<2x16xf32, #tpu.memory_space<vmem>> -> memref<1x16xf32, #tpu.memory_space<vmem>>
      %57 = tpu.memref_squeeze %56 : memref<1x16xf32, #tpu.memory_space<vmem>> -> memref<16xf32, #tpu.memory_space<vmem>>
      %58 = tpu.memref_slice %arg24[%c0_i32_39] : memref<2x!tpu.dma_semaphore, #tpu.memory_space<semaphore_mem>> -> memref<1x!tpu.dma_semaphore, #tpu.memory_space<semaphore_mem>>
      %59 = tpu.memref_squeeze %58 : memref<1x!tpu.dma_semaphore, #tpu.memory_space<semaphore_mem>> -> memref<!tpu.dma_semaphore, #tpu.memory_space<semaphore_mem>>
      tpu.wait_dma2 semaphore(%59 : memref<!tpu.dma_semaphore, #tpu.memory_space<semaphore_mem>>) src(%55 : memref<16xf32, #tpu.memory_space<any>>) dst(%57 : memref<16xf32, #tpu.memory_space<vmem>>)
      %c1_i32_42 = arith.constant 1 : i32
      %c1_i32_43 = arith.constant 1 : i32
      %c0_i32_44 = arith.constant 0 : i32
      %60 = tpu.memref_slice %arg6[%17, %c0_i32_44] : memref<20x16xf32, #tpu.memory_space<any>> -> memref<1x16xf32, #tpu.memory_space<any>>
      %61 = tpu.memref_squeeze %60 : memref<1x16xf32, #tpu.memory_space<any>> -> memref<16xf32, #tpu.memory_space<any>>
      %c0_i32_45 = arith.constant 0 : i32
      %62 = tpu.memref_slice %arg23[%c1_i32_42, %c0_i32_45] : memref<2x16xf32, #tpu.memory_space<vmem>> -> memref<1x16xf32, #tpu.memory_space<vmem>>
      %63 = tpu.memref_squeeze %62 : memref<1x16xf32, #tpu.memory_space<vmem>> -> memref<16xf32, #tpu.memory_space<vmem>>
      %64 = tpu.memref_slice %arg24[%c1_i32_43] : memref<2x!tpu.dma_semaphore, #tpu.memory_space<semaphore_mem>> -> memref<1x!tpu.dma_semaphore, #tpu.memory_space<semaphore_mem>>
      %65 = tpu.memref_squeeze %64 : memref<1x!tpu.dma_semaphore, #tpu.memory_space<semaphore_mem>> -> memref<!tpu.dma_semaphore, #tpu.memory_space<semaphore_mem>>
      tpu.wait_dma2 semaphore(%65 : memref<!tpu.dma_semaphore, #tpu.memory_space<semaphore_mem>>) src(%61 : memref<16xf32, #tpu.memory_space<any>>) dst(%63 : memref<16xf32, #tpu.memory_space<vmem>>)
      %c0_46 = arith.constant 0 : index
      %c0_47 = arith.constant 0 : index
      %66 = vector.load %arg23[%c0_46, %c0_47] : memref<2x16xf32, #tpu.memory_space<vmem>>, vector<2x16xf32>
      %c0_48 = arith.constant 0 : index
      %c0_49 = arith.constant 0 : index
      %c0_50 = arith.constant 0 : index
      %67 = vector.load %arg5[%c0_48, %c0_49, %c0_50] : memref<2x2x32xf32, #tpu.memory_space<vmem>>, vector<1x2x32xf32>
      %68 = vector.shape_cast %67 : vector<1x2x32xf32> to vector<2x32xf32>
      %c1_51 = arith.constant 1 : index
      %c0_52 = arith.constant 0 : index
      %c0_53 = arith.constant 0 : index
      %69 = vector.load %arg5[%c1_51, %c0_52, %c0_53] : memref<2x2x32xf32, #tpu.memory_space<vmem>>, vector<1x2x32xf32>
      %70 = vector.shape_cast %69 : vector<1x2x32xf32> to vector<2x32xf32>
      %c0_54 = arith.constant 0 : index
      %c0_55 = arith.constant 0 : index
      %c0_56 = arith.constant 0 : index
      %71 = vector.load %arg10[%c0_54, %c0_55, %c0_56] : memref<3x16x32xf32, #tpu.memory_space<vmem>>, vector<1x16x32xf32>
      %72 = vector.shape_cast %71 : vector<1x16x32xf32> to vector<16x32xf32>
      %cst_57 = arith.constant dense<0.000000e+00> : vector<2x32xf32>
      %73 = tpu.matmul %66, %72, %cst_57 {dimension_numbers = #tpu.dot_dimension_numbers<[1], [0], [0], [1], [0, 0, 1, 1], [], []>} : vector<2x16xf32>, vector<16x32xf32>, vector<2x32xf32> -> vector<2x32xf32>
      %c0_58 = arith.constant 0 : index
      %c0_59 = arith.constant 0 : index
      %c0_60 = arith.constant 0 : index
      %74 = vector.load %arg11[%c0_58, %c0_59, %c0_60] : memref<3x32x32xf32, #tpu.memory_space<vmem>>, vector<1x32x32xf32>
      %75 = vector.shape_cast %74 : vector<1x32x32xf32> to vector<32x32xf32>
      %cst_61 = arith.constant dense<0.000000e+00> : vector<2x32xf32>
      %76 = tpu.matmul %53, %75, %cst_61 {dimension_numbers = #tpu.dot_dimension_numbers<[1], [0], [0], [1], [0, 0, 1, 1], [], []>} : vector<2x32xf32>, vector<32x32xf32>, vector<2x32xf32> -> vector<2x32xf32>
      %77 = arith.addf %73, %76 : vector<2x32xf32>
      %c0_62 = arith.constant 0 : index
      %c0_63 = arith.constant 0 : index
      %c0_64 = arith.constant 0 : index
      %78 = vector.load %arg13[%c0_62, %c0_63, %c0_64] : memref<3x1x32xf32, #tpu.memory_space<vmem>>, vector<1x1x32xf32>
      %79 = vector.shape_cast %78 : vector<1x1x32xf32> to vector<1x32xf32>
      %80 = vector.broadcast %79 : vector<1x32xf32> to vector<2x32xf32>
      %81 = arith.addf %77, %80 : vector<2x32xf32>
      %c0_65 = arith.constant 0 : index
      %c0_66 = arith.constant 0 : index
      %c0_67 = arith.constant 0 : index
      %82 = vector.load %arg12[%c0_65, %c0_66, %c0_67] : memref<3x32x32xf32, #tpu.memory_space<vmem>>, vector<1x32x32xf32>
      %83 = vector.shape_cast %82 : vector<1x32x32xf32> to vector<32x32xf32>
      %cst_68 = arith.constant dense<0.000000e+00> : vector<2x32xf32>
      %84 = tpu.matmul %68, %83, %cst_68 {dimension_numbers = #tpu.dot_dimension_numbers<[1], [0], [0], [1], [0, 0, 1, 1], [], []>} : vector<2x32xf32>, vector<32x32xf32>, vector<2x32xf32> -> vector<2x32xf32>
      %c0_69 = arith.constant 0 : index
      %c0_70 = arith.constant 0 : index
      %c0_71 = arith.constant 0 : index
      %85 = vector.load %arg14[%c0_69, %c0_70, %c0_71] : memref<3x1x32xf32, #tpu.memory_space<vmem>>, vector<1x1x32xf32>
      %86 = vector.shape_cast %85 : vector<1x1x32xf32> to vector<1x32xf32>
      %87 = vector.broadcast %86 : vector<1x32xf32> to vector<2x32xf32>
      %88 = arith.addf %84, %87 : vector<2x32xf32>
      %89 = arith.addf %81, %88 : vector<2x32xf32>
      %90 = arith.negf %89 : vector<2x32xf32>
      %91 = math.exp %90 : vector<2x32xf32>
      %cst_72 = arith.constant 1.000000e+00 : f32
      %92 = vector.broadcast %cst_72 : f32 to vector<2x32xf32>
      %93 = arith.addf %92, %91 : vector<2x32xf32>
      %94 = arith.divf %92, %93 : vector<2x32xf32>
      %c1_73 = arith.constant 1 : index
      %c0_74 = arith.constant 0 : index
      %c0_75 = arith.constant 0 : index
      %95 = vector.load %arg10[%c1_73, %c0_74, %c0_75] : memref<3x16x32xf32, #tpu.memory_space<vmem>>, vector<1x16x32xf32>
      %96 = vector.shape_cast %95 : vector<1x16x32xf32> to vector<16x32xf32>
      %cst_76 = arith.constant dense<0.000000e+00> : vector<2x32xf32>
      %97 = tpu.matmul %66, %96, %cst_76 {dimension_numbers = #tpu.dot_dimension_numbers<[1], [0], [0], [1], [0, 0, 1, 1], [], []>} : vector<2x16xf32>, vector<16x32xf32>, vector<2x32xf32> -> vector<2x32xf32>
      %c1_77 = arith.constant 1 : index
      %c0_78 = arith.constant 0 : index
      %c0_79 = arith.constant 0 : index
      %98 = vector.load %arg11[%c1_77, %c0_78, %c0_79] : memref<3x32x32xf32, #tpu.memory_space<vmem>>, vector<1x32x32xf32>
      %99 = vector.shape_cast %98 : vector<1x32x32xf32> to vector<32x32xf32>
      %cst_80 = arith.constant dense<0.000000e+00> : vector<2x32xf32>
      %100 = tpu.matmul %53, %99, %cst_80 {dimension_numbers = #tpu.dot_dimension_numbers<[1], [0], [0], [1], [0, 0, 1, 1], [], []>} : vector<2x32xf32>, vector<32x32xf32>, vector<2x32xf32> -> vector<2x32xf32>
      %101 = arith.addf %97, %100 : vector<2x32xf32>
      %c1_81 = arith.constant 1 : index
      %c0_82 = arith.constant 0 : index
      %c0_83 = arith.constant 0 : index
      %102 = vector.load %arg13[%c1_81, %c0_82, %c0_83] : memref<3x1x32xf32, #tpu.memory_space<vmem>>, vector<1x1x32xf32>
      %103 = vector.shape_cast %102 : vector<1x1x32xf32> to vector<1x32xf32>
      %104 = vector.broadcast %103 : vector<1x32xf32> to vector<2x32xf32>
      %105 = arith.addf %101, %104 : vector<2x32xf32>
      %c1_84 = arith.constant 1 : index
      %c0_85 = arith.constant 0 : index
      %c0_86 = arith.constant 0 : index
      %106 = vector.load %arg12[%c1_84, %c0_85, %c0_86] : memref<3x32x32xf32, #tpu.memory_space<vmem>>, vector<1x32x32xf32>
      %107 = vector.shape_cast %106 : vector<1x32x32xf32> to vector<32x32xf32>
      %cst_87 = arith.constant dense<0.000000e+00> : vector<2x32xf32>
      %108 = tpu.matmul %68, %107, %cst_87 {dimension_numbers = #tpu.dot_dimension_numbers<[1], [0], [0], [1], [0, 0, 1, 1], [], []>} : vector<2x32xf32>, vector<32x32xf32>, vector<2x32xf32> -> vector<2x32xf32>
      %c1_88 = arith.constant 1 : index
      %c0_89 = arith.constant 0 : index
      %c0_90 = arith.constant 0 : index
      %109 = vector.load %arg14[%c1_88, %c0_89, %c0_90] : memref<3x1x32xf32, #tpu.memory_space<vmem>>, vector<1x1x32xf32>
      %110 = vector.shape_cast %109 : vector<1x1x32xf32> to vector<1x32xf32>
      %111 = vector.broadcast %110 : vector<1x32xf32> to vector<2x32xf32>
      %112 = arith.addf %108, %111 : vector<2x32xf32>
      %113 = arith.addf %105, %112 : vector<2x32xf32>
      %114 = arith.negf %113 : vector<2x32xf32>
      %115 = math.exp %114 : vector<2x32xf32>
      %cst_91 = arith.constant 1.000000e+00 : f32
      %116 = vector.broadcast %cst_91 : f32 to vector<2x32xf32>
      %117 = arith.addf %116, %115 : vector<2x32xf32>
      %118 = arith.divf %116, %117 : vector<2x32xf32>
      %c2 = arith.constant 2 : index
      %c0_92 = arith.constant 0 : index
      %c0_93 = arith.constant 0 : index
      %119 = vector.load %arg10[%c2, %c0_92, %c0_93] : memref<3x16x32xf32, #tpu.memory_space<vmem>>, vector<1x16x32xf32>
      %120 = vector.shape_cast %119 : vector<1x16x32xf32> to vector<16x32xf32>
      %cst_94 = arith.constant dense<0.000000e+00> : vector<2x32xf32>
      %121 = tpu.matmul %66, %120, %cst_94 {dimension_numbers = #tpu.dot_dimension_numbers<[1], [0], [0], [1], [0, 0, 1, 1], [], []>} : vector<2x16xf32>, vector<16x32xf32>, vector<2x32xf32> -> vector<2x32xf32>
      %c2_95 = arith.constant 2 : index
      %c0_96 = arith.constant 0 : index
      %c0_97 = arith.constant 0 : index
      %122 = vector.load %arg11[%c2_95, %c0_96, %c0_97] : memref<3x32x32xf32, #tpu.memory_space<vmem>>, vector<1x32x32xf32>
      %123 = vector.shape_cast %122 : vector<1x32x32xf32> to vector<32x32xf32>
      %cst_98 = arith.constant dense<0.000000e+00> : vector<2x32xf32>
      %124 = tpu.matmul %53, %123, %cst_98 {dimension_numbers = #tpu.dot_dimension_numbers<[1], [0], [0], [1], [0, 0, 1, 1], [], []>} : vector<2x32xf32>, vector<32x32xf32>, vector<2x32xf32> -> vector<2x32xf32>
      %125 = arith.addf %121, %124 : vector<2x32xf32>
      %c2_99 = arith.constant 2 : index
      %c0_100 = arith.constant 0 : index
      %c0_101 = arith.constant 0 : index
      %126 = vector.load %arg13[%c2_99, %c0_100, %c0_101] : memref<3x1x32xf32, #tpu.memory_space<vmem>>, vector<1x1x32xf32>
      %127 = vector.shape_cast %126 : vector<1x1x32xf32> to vector<1x32xf32>
      %128 = vector.broadcast %127 : vector<1x32xf32> to vector<2x32xf32>
      %129 = arith.addf %125, %128 : vector<2x32xf32>
      %c2_102 = arith.constant 2 : index
      %c0_103 = arith.constant 0 : index
      %c0_104 = arith.constant 0 : index
      %130 = vector.load %arg12[%c2_102, %c0_103, %c0_104] : memref<3x32x32xf32, #tpu.memory_space<vmem>>, vector<1x32x32xf32>
      %131 = vector.shape_cast %130 : vector<1x32x32xf32> to vector<32x32xf32>
      %cst_105 = arith.constant dense<0.000000e+00> : vector<2x32xf32>
      %132 = tpu.matmul %68, %131, %cst_105 {dimension_numbers = #tpu.dot_dimension_numbers<[1], [0], [0], [1], [0, 0, 1, 1], [], []>} : vector<2x32xf32>, vector<32x32xf32>, vector<2x32xf32> -> vector<2x32xf32>
      %c2_106 = arith.constant 2 : index
      %c0_107 = arith.constant 0 : index
      %c0_108 = arith.constant 0 : index
      %133 = vector.load %arg14[%c2_106, %c0_107, %c0_108] : memref<3x1x32xf32, #tpu.memory_space<vmem>>, vector<1x1x32xf32>
      %134 = vector.shape_cast %133 : vector<1x1x32xf32> to vector<1x32xf32>
      %135 = vector.broadcast %134 : vector<1x32xf32> to vector<2x32xf32>
      %136 = arith.addf %132, %135 : vector<2x32xf32>
      %137 = arith.mulf %94, %136 : vector<2x32xf32>
      %138 = arith.addf %129, %137 : vector<2x32xf32>
      %139 = math.tanh %138 : vector<2x32xf32>
      %cst_109 = arith.constant 1.000000e+00 : f32
      %140 = vector.broadcast %cst_109 : f32 to vector<2x32xf32>
      %141 = arith.subf %140, %118 : vector<2x32xf32>
      %142 = arith.mulf %141, %139 : vector<2x32xf32>
      %143 = arith.mulf %118, %68 : vector<2x32xf32>
      %144 = arith.addf %142, %143 : vector<2x32xf32>
      %c0_110 = arith.constant 0 : index
      %c0_111 = arith.constant 0 : index
      %c0_112 = arith.constant 0 : index
      %145 = vector.load %arg15[%c0_110, %c0_111, %c0_112] : memref<3x32x32xf32, #tpu.memory_space<vmem>>, vector<1x32x32xf32>
      %146 = vector.shape_cast %145 : vector<1x32x32xf32> to vector<32x32xf32>
      %cst_113 = arith.constant dense<0.000000e+00> : vector<2x32xf32>
      %147 = tpu.matmul %144, %146, %cst_113 {dimension_numbers = #tpu.dot_dimension_numbers<[1], [0], [0], [1], [0, 0, 1, 1], [], []>} : vector<2x32xf32>, vector<32x32xf32>, vector<2x32xf32> -> vector<2x32xf32>
      %c0_114 = arith.constant 0 : index
      %c0_115 = arith.constant 0 : index
      %c0_116 = arith.constant 0 : index
      %148 = vector.load %arg17[%c0_114, %c0_115, %c0_116] : memref<3x1x32xf32, #tpu.memory_space<vmem>>, vector<1x1x32xf32>
      %149 = vector.shape_cast %148 : vector<1x1x32xf32> to vector<1x32xf32>
      %150 = vector.broadcast %149 : vector<1x32xf32> to vector<2x32xf32>
      %151 = arith.addf %147, %150 : vector<2x32xf32>
      %c0_117 = arith.constant 0 : index
      %c0_118 = arith.constant 0 : index
      %c0_119 = arith.constant 0 : index
      %152 = vector.load %arg16[%c0_117, %c0_118, %c0_119] : memref<3x32x32xf32, #tpu.memory_space<vmem>>, vector<1x32x32xf32>
      %153 = vector.shape_cast %152 : vector<1x32x32xf32> to vector<32x32xf32>
      %cst_120 = arith.constant dense<0.000000e+00> : vector<2x32xf32>
      %154 = tpu.matmul %70, %153, %cst_120 {dimension_numbers = #tpu.dot_dimension_numbers<[1], [0], [0], [1], [0, 0, 1, 1], [], []>} : vector<2x32xf32>, vector<32x32xf32>, vector<2x32xf32> -> vector<2x32xf32>
      %c0_121 = arith.constant 0 : index
      %c0_122 = arith.constant 0 : index
      %c0_123 = arith.constant 0 : index
      %155 = vector.load %arg18[%c0_121, %c0_122, %c0_123] : memref<3x1x32xf32, #tpu.memory_space<vmem>>, vector<1x1x32xf32>
      %156 = vector.shape_cast %155 : vector<1x1x32xf32> to vector<1x32xf32>
      %157 = vector.broadcast %156 : vector<1x32xf32> to vector<2x32xf32>
      %158 = arith.addf %154, %157 : vector<2x32xf32>
      %159 = arith.addf %151, %158 : vector<2x32xf32>
      %160 = arith.negf %159 : vector<2x32xf32>
      %161 = math.exp %160 : vector<2x32xf32>
      %cst_124 = arith.constant 1.000000e+00 : f32
      %162 = vector.broadcast %cst_124 : f32 to vector<2x32xf32>
      %163 = arith.addf %162, %161 : vector<2x32xf32>
      %164 = arith.divf %162, %163 : vector<2x32xf32>
      %c1_125 = arith.constant 1 : index
      %c0_126 = arith.constant 0 : index
      %c0_127 = arith.constant 0 : index
      %165 = vector.load %arg15[%c1_125, %c0_126, %c0_127] : memref<3x32x32xf32, #tpu.memory_space<vmem>>, vector<1x32x32xf32>
      %166 = vector.shape_cast %165 : vector<1x32x32xf32> to vector<32x32xf32>
      %cst_128 = arith.constant dense<0.000000e+00> : vector<2x32xf32>
      %167 = tpu.matmul %144, %166, %cst_128 {dimension_numbers = #tpu.dot_dimension_numbers<[1], [0], [0], [1], [0, 0, 1, 1], [], []>} : vector<2x32xf32>, vector<32x32xf32>, vector<2x32xf32> -> vector<2x32xf32>
      %c1_129 = arith.constant 1 : index
      %c0_130 = arith.constant 0 : index
      %c0_131 = arith.constant 0 : index
      %168 = vector.load %arg17[%c1_129, %c0_130, %c0_131] : memref<3x1x32xf32, #tpu.memory_space<vmem>>, vector<1x1x32xf32>
      %169 = vector.shape_cast %168 : vector<1x1x32xf32> to vector<1x32xf32>
      %170 = vector.broadcast %169 : vector<1x32xf32> to vector<2x32xf32>
      %171 = arith.addf %167, %170 : vector<2x32xf32>
      %c1_132 = arith.constant 1 : index
      %c0_133 = arith.constant 0 : index
      %c0_134 = arith.constant 0 : index
      %172 = vector.load %arg16[%c1_132, %c0_133, %c0_134] : memref<3x32x32xf32, #tpu.memory_space<vmem>>, vector<1x32x32xf32>
      %173 = vector.shape_cast %172 : vector<1x32x32xf32> to vector<32x32xf32>
      %cst_135 = arith.constant dense<0.000000e+00> : vector<2x32xf32>
      %174 = tpu.matmul %70, %173, %cst_135 {dimension_numbers = #tpu.dot_dimension_numbers<[1], [0], [0], [1], [0, 0, 1, 1], [], []>} : vector<2x32xf32>, vector<32x32xf32>, vector<2x32xf32> -> vector<2x32xf32>
      %c1_136 = arith.constant 1 : index
      %c0_137 = arith.constant 0 : index
      %c0_138 = arith.constant 0 : index
      %175 = vector.load %arg18[%c1_136, %c0_137, %c0_138] : memref<3x1x32xf32, #tpu.memory_space<vmem>>, vector<1x1x32xf32>
      %176 = vector.shape_cast %175 : vector<1x1x32xf32> to vector<1x32xf32>
      %177 = vector.broadcast %176 : vector<1x32xf32> to vector<2x32xf32>
      %178 = arith.addf %174, %177 : vector<2x32xf32>
      %179 = arith.addf %171, %178 : vector<2x32xf32>
      %180 = arith.negf %179 : vector<2x32xf32>
      %181 = math.exp %180 : vector<2x32xf32>
      %cst_139 = arith.constant 1.000000e+00 : f32
      %182 = vector.broadcast %cst_139 : f32 to vector<2x32xf32>
      %183 = arith.addf %182, %181 : vector<2x32xf32>
      %184 = arith.divf %182, %183 : vector<2x32xf32>
      %c2_140 = arith.constant 2 : index
      %c0_141 = arith.constant 0 : index
      %c0_142 = arith.constant 0 : index
      %185 = vector.load %arg15[%c2_140, %c0_141, %c0_142] : memref<3x32x32xf32, #tpu.memory_space<vmem>>, vector<1x32x32xf32>
      %186 = vector.shape_cast %185 : vector<1x32x32xf32> to vector<32x32xf32>
      %cst_143 = arith.constant dense<0.000000e+00> : vector<2x32xf32>
      %187 = tpu.matmul %144, %186, %cst_143 {dimension_numbers = #tpu.dot_dimension_numbers<[1], [0], [0], [1], [0, 0, 1, 1], [], []>} : vector<2x32xf32>, vector<32x32xf32>, vector<2x32xf32> -> vector<2x32xf32>
      %c2_144 = arith.constant 2 : index
      %c0_145 = arith.constant 0 : index
      %c0_146 = arith.constant 0 : index
      %188 = vector.load %arg17[%c2_144, %c0_145, %c0_146] : memref<3x1x32xf32, #tpu.memory_space<vmem>>, vector<1x1x32xf32>
      %189 = vector.shape_cast %188 : vector<1x1x32xf32> to vector<1x32xf32>
      %190 = vector.broadcast %189 : vector<1x32xf32> to vector<2x32xf32>
      %191 = arith.addf %187, %190 : vector<2x32xf32>
      %c2_147 = arith.constant 2 : index
      %c0_148 = arith.constant 0 : index
      %c0_149 = arith.constant 0 : index
      %192 = vector.load %arg16[%c2_147, %c0_148, %c0_149] : memref<3x32x32xf32, #tpu.memory_space<vmem>>, vector<1x32x32xf32>
      %193 = vector.shape_cast %192 : vector<1x32x32xf32> to vector<32x32xf32>
      %cst_150 = arith.constant dense<0.000000e+00> : vector<2x32xf32>
      %194 = tpu.matmul %70, %193, %cst_150 {dimension_numbers = #tpu.dot_dimension_numbers<[1], [0], [0], [1], [0, 0, 1, 1], [], []>} : vector<2x32xf32>, vector<32x32xf32>, vector<2x32xf32> -> vector<2x32xf32>
      %c2_151 = arith.constant 2 : index
      %c0_152 = arith.constant 0 : index
      %c0_153 = arith.constant 0 : index
      %195 = vector.load %arg18[%c2_151, %c0_152, %c0_153] : memref<3x1x32xf32, #tpu.memory_space<vmem>>, vector<1x1x32xf32>
      %196 = vector.shape_cast %195 : vector<1x1x32xf32> to vector<1x32xf32>
      %197 = vector.broadcast %196 : vector<1x32xf32> to vector<2x32xf32>
      %198 = arith.addf %194, %197 : vector<2x32xf32>
      %199 = arith.mulf %164, %198 : vector<2x32xf32>
      %200 = arith.addf %191, %199 : vector<2x32xf32>
      %201 = math.tanh %200 : vector<2x32xf32>
      %cst_154 = arith.constant 1.000000e+00 : f32
      %202 = vector.broadcast %cst_154 : f32 to vector<2x32xf32>
      %203 = arith.subf %202, %184 : vector<2x32xf32>
      %204 = arith.mulf %203, %201 : vector<2x32xf32>
      %205 = arith.mulf %184, %70 : vector<2x32xf32>
      %206 = arith.addf %204, %205 : vector<2x32xf32>
      %c0_155 = arith.constant 0 : index
      %c0_156 = arith.constant 0 : index
      %c0_157 = arith.constant 0 : index
      %207 = vector.load %arg22[%c0_155, %c0_156, %c0_157] : memref<2x2x32xf32, #tpu.memory_space<vmem>>, vector<1x2x32xf32>
      %208 = vector.shape_cast %207 : vector<1x2x32xf32> to vector<2x32xf32>
      %209 = vector.shape_cast %144 : vector<2x32xf32> to vector<1x2x32xf32>
      tpu.vector_store %arg22[%c0_155, %c0_156, %c0_157], %209 {strides = array<i32>} : memref<2x2x32xf32, #tpu.memory_space<vmem>>, vector<1x2x32xf32>,
      %c1_158 = arith.constant 1 : index
      %c0_159 = arith.constant 0 : index
      %c0_160 = arith.constant 0 : index
      %210 = vector.load %arg22[%c1_158, %c0_159, %c0_160] : memref<2x2x32xf32, #tpu.memory_space<vmem>>, vector<1x2x32xf32>
      %211 = vector.shape_cast %210 : vector<1x2x32xf32> to vector<2x32xf32>
      %212 = vector.shape_cast %206 : vector<2x32xf32> to vector<1x2x32xf32>
      tpu.vector_store %arg22[%c1_158, %c0_159, %c0_160], %212 {strides = array<i32>} : memref<2x2x32xf32, #tpu.memory_space<vmem>>, vector<1x2x32xf32>,
      %c0_161 = arith.constant 0 : index
      %c0_162 = arith.constant 0 : index
      %213 = vector.load %arg25[%c0_161, %c0_162] : memref<2x32xf32, #tpu.memory_space<vmem>>, vector<2x32xf32>
      tpu.vector_store %arg25[%c0_161, %c0_162], %206 {strides = array<i32>} : memref<2x32xf32, #tpu.memory_space<vmem>>, vector<2x32xf32>,
    } else {
    }
    %c0 = arith.constant 0 : index
    %c0_1 = arith.constant 0 : index
    %3 = vector.load %arg25[%c0, %c0_1] : memref<2x32xf32, #tpu.memory_space<vmem>>, vector<2x32xf32>
    %c0_2 = arith.constant 0 : index
    %c0_3 = arith.constant 0 : index
    %4 = vector.load %arg19[%c0_2, %c0_3] : memref<32x20xf32, #tpu.memory_space<vmem>>, vector<32x20xf32>
    %cst = arith.constant dense<0.000000e+00> : vector<2x20xf32>
    %5 = tpu.matmul %3, %4, %cst {dimension_numbers = #tpu.dot_dimension_numbers<[1], [0], [0], [1], [0, 0, 1, 1], [], []>} : vector<2x32xf32>, vector<32x20xf32>, vector<2x20xf32> -> vector<2x20xf32>
    %c0_4 = arith.constant 0 : index
    %c0_5 = arith.constant 0 : index
    %6 = vector.load %arg20[%c0_4, %c0_5] : memref<1x20xf32, #tpu.memory_space<vmem>>, vector<1x20xf32>
    %7 = vector.broadcast %6 : vector<1x20xf32> to vector<2x20xf32>
    %8 = arith.addf %5, %7 : vector<2x20xf32>
    %c0_6 = arith.constant 0 : index
    %c0_7 = arith.constant 0 : index
    %9 = vector.load %arg21[%c0_6, %c0_7] : memref<2x20xf32, #tpu.memory_space<vmem>>, vector<2x20xf32>
    tpu.vector_store %arg21[%c0_6, %c0_7], %8 {strides = array<i32>} : memref<2x20xf32, #tpu.memory_space<vmem>>, vector<2x20xf32>,
    return
  }
  func.func @transform_0(%arg0: i32, %arg1: memref<2xi32, #tpu.memory_space<smem>>) -> (i32, i32) {
    %c0_i32 = arith.constant 0 : i32
    %c0_i32_0 = arith.constant 0 : i32
    %c0_i32_1 = arith.constant 0 : i32
    return %c0_i32, %c0_i32_0 : i32, i32
  }
  func.func @transform_1(%arg0: i32, %arg1: memref<2xi32, #tpu.memory_space<smem>>) -> (i32, i32) {
    %c0_i32 = arith.constant 0 : i32
    %c0_i32_0 = arith.constant 0 : i32
    %c0_i32_1 = arith.constant 0 : i32
    return %c0_i32, %c0_i32_0 : i32, i32
  }
  func.func @transform_2(%arg0: i32, %arg1: memref<2xi32, #tpu.memory_space<smem>>) -> (i32, i32) {
    %c0_i32 = arith.constant 0 : i32
    %c0_i32_0 = arith.constant 0 : i32
    %c0_i32_1 = arith.constant 0 : i32
    return %c0_i32, %c0_i32_0 : i32, i32
  }
  func.func @transform_3(%arg0: i32, %arg1: memref<2xi32, #tpu.memory_space<smem>>) -> (i32, i32, i32) {
    %c0_i32 = arith.constant 0 : i32
    %c0_i32_0 = arith.constant 0 : i32
    %c0_i32_1 = arith.constant 0 : i32
    %c0_i32_2 = arith.constant 0 : i32
    return %c0_i32, %c0_i32_0, %c0_i32_1 : i32, i32, i32
  }
  func.func @transform_5(%arg0: i32, %arg1: memref<2xi32, #tpu.memory_space<smem>>) -> (i32, i32) {
    %c0_i32 = arith.constant 0 : i32
    %c0_i32_0 = arith.constant 0 : i32
    %c0_i32_1 = arith.constant 0 : i32
    return %c0_i32, %c0_i32_0 : i32, i32
  }
  func.func @transform_6(%arg0: i32, %arg1: memref<2xi32, #tpu.memory_space<smem>>) -> (i32, i32) {
    %c0_i32 = arith.constant 0 : i32
    %c0_i32_0 = arith.constant 0 : i32
    %c0_i32_1 = arith.constant 0 : i32
    return %c0_i32, %c0_i32_0 : i32, i32
  }
  func.func @transform_7(%arg0: i32, %arg1: memref<2xi32, #tpu.memory_space<smem>>) -> (i32, i32) {
    %c0_i32 = arith.constant 0 : i32
    %c0_i32_0 = arith.constant 0 : i32
    %c0_i32_1 = arith.constant 0 : i32
    return %c0_i32, %c0_i32_0 : i32, i32
  }
  func.func @transform_8(%arg0: i32, %arg1: memref<2xi32, #tpu.memory_space<smem>>) -> (i32, i32, i32) {
    %c0_i32 = arith.constant 0 : i32
    %c0_i32_0 = arith.constant 0 : i32
    %c0_i32_1 = arith.constant 0 : i32
    %c0_i32_2 = arith.constant 0 : i32
    return %c0_i32, %c0_i32_0, %c0_i32_1 : i32, i32, i32
  }
  func.func @transform_9(%arg0: i32, %arg1: memref<2xi32, #tpu.memory_space<smem>>) -> (i32, i32, i32) {
    %c0_i32 = arith.constant 0 : i32
    %c0_i32_0 = arith.constant 0 : i32
    %c0_i32_1 = arith.constant 0 : i32
    %c0_i32_2 = arith.constant 0 : i32
    return %c0_i32, %c0_i32_0, %c0_i32_1 : i32, i32, i32
  }
  func.func @transform_10(%arg0: i32, %arg1: memref<2xi32, #tpu.memory_space<smem>>) -> (i32, i32, i32) {
    %c0_i32 = arith.constant 0 : i32
    %c0_i32_0 = arith.constant 0 : i32
    %c0_i32_1 = arith.constant 0 : i32
    %c0_i32_2 = arith.constant 0 : i32
    return %c0_i32, %c0_i32_0, %c0_i32_1 : i32, i32, i32
  }
  func.func @transform_11(%arg0: i32, %arg1: memref<2xi32, #tpu.memory_space<smem>>) -> (i32, i32, i32) {
    %c0_i32 = arith.constant 0 : i32
    %c0_i32_0 = arith.constant 0 : i32
    %c0_i32_1 = arith.constant 0 : i32
    %c0_i32_2 = arith.constant 0 : i32
    return %c0_i32, %c0_i32_0, %c0_i32_1 : i32, i32, i32
  }
  func.func @transform_12(%arg0: i32, %arg1: memref<2xi32, #tpu.memory_space<smem>>) -> (i32, i32, i32) {
    %c0_i32 = arith.constant 0 : i32
    %c0_i32_0 = arith.constant 0 : i32
    %c0_i32_1 = arith.constant 0 : i32
    %c0_i32_2 = arith.constant 0 : i32
    return %c0_i32, %c0_i32_0, %c0_i32_1 : i32, i32, i32
  }
  func.func @transform_13(%arg0: i32, %arg1: memref<2xi32, #tpu.memory_space<smem>>) -> (i32, i32, i32) {
    %c0_i32 = arith.constant 0 : i32
    %c0_i32_0 = arith.constant 0 : i32
    %c0_i32_1 = arith.constant 0 : i32
    %c0_i32_2 = arith.constant 0 : i32
    return %c0_i32, %c0_i32_0, %c0_i32_1 : i32, i32, i32
  }
  func.func @transform_14(%arg0: i32, %arg1: memref<2xi32, #tpu.memory_space<smem>>) -> (i32, i32, i32) {
    %c0_i32 = arith.constant 0 : i32
    %c0_i32_0 = arith.constant 0 : i32
    %c0_i32_1 = arith.constant 0 : i32
    %c0_i32_2 = arith.constant 0 : i32
    return %c0_i32, %c0_i32_0, %c0_i32_1 : i32, i32, i32
  }
  func.func @transform_15(%arg0: i32, %arg1: memref<2xi32, #tpu.memory_space<smem>>) -> (i32, i32, i32) {
    %c0_i32 = arith.constant 0 : i32
    %c0_i32_0 = arith.constant 0 : i32
    %c0_i32_1 = arith.constant 0 : i32
    %c0_i32_2 = arith.constant 0 : i32
    return %c0_i32, %c0_i32_0, %c0_i32_1 : i32, i32, i32
  }
  func.func @transform_16(%arg0: i32, %arg1: memref<2xi32, #tpu.memory_space<smem>>) -> (i32, i32, i32) {
    %c0_i32 = arith.constant 0 : i32
    %c0_i32_0 = arith.constant 0 : i32
    %c0_i32_1 = arith.constant 0 : i32
    %c0_i32_2 = arith.constant 0 : i32
    return %c0_i32, %c0_i32_0, %c0_i32_1 : i32, i32, i32
  }
  func.func @transform_17(%arg0: i32, %arg1: memref<2xi32, #tpu.memory_space<smem>>) -> (i32, i32) {
    %c0_i32 = arith.constant 0 : i32
    %c0_i32_0 = arith.constant 0 : i32
    return %c0_i32, %arg0 : i32, i32
  }
  func.func @transform_18(%arg0: i32, %arg1: memref<2xi32, #tpu.memory_space<smem>>) -> (i32, i32) {
    %c0_i32 = arith.constant 0 : i32
    %c0_i32_0 = arith.constant 0 : i32
    return %c0_i32, %arg0 : i32, i32
  }
  func.func @transform_19(%arg0: i32, %arg1: memref<2xi32, #tpu.memory_space<smem>>) -> (i32, i32) {
    %c0_i32 = arith.constant 0 : i32
    %c0_i32_0 = arith.constant 0 : i32
    return %c0_i32, %arg0 : i32, i32
  }
  func.func @transform_20(%arg0: i32, %arg1: memref<2xi32, #tpu.memory_space<smem>>) -> (i32, i32, i32) {
    %c0_i32 = arith.constant 0 : i32
    %c0_i32_0 = arith.constant 0 : i32
    %c0_i32_1 = arith.constant 0 : i32
    %c0_i32_2 = arith.constant 0 : i32
    return %c0_i32, %c0_i32_0, %c0_i32_1 : i32, i32, i32
  }
}

</mosaic_0001>

<llo_original>
// kernel: tpu_custom_call.1
$region0: #{tpu_custom_call.1}
  #allocation0 [shape = 'u32[]', space=smem, size = 0x4, offset = 0x4, fixed_abs, tag = 'smem constant byte address 0x4 - core index']
  #allocation1 [shape = 'u32[72,128]{1,0:T(1,128)}', space=vmem, size = 0x9000, scoped, tag = 'internal scratch']
  #allocation2 [shape = 'f32[2,16]{1,0:T(2,128)}', space=vmem, size = 0x400, scoped, tag = 'scratch operand']
  #allocation3 [shape = 's32[2]{0}', space=sflag, size = 0x8, scoped, tag = 'scratch operand']
  #allocation4 [shape = 'f32[2,32]{1,0:T(2,128)}', space=vmem, size = 0x400, scoped, tag = 'scratch operand']
  #allocation5 [shape = 's32[1]{0}', space=sflag, size = 0x4, scoped, tag = 'scoped memory for tpu_custom_call.1']
  #allocation6 [shape = 'u8[512]{0}', space=smem, size = 0x200, scoped, tag = 'prefetched SMEM operand 0']
  #allocation18 [shape = 's32[]', space=sflag, size = 0x4, offset = 0, fixed_abs, tag = 'sflag constant byte address 0x0 - dummy sync flag']
  #allocation19 [shape = 's32[]', space=sflag, size = 0x4, offset = 0, fixed_abs, tag = 'sflag constant byte address 0x0 - dummy sync flag']
  %s0 = inlined_call_operand.vmem [shape: s32[2], index: 0, kind: input, shape index: {}]
  %s1 = inlined_call_operand.vmem [shape: f32[16,32], index: 1, kind: input, shape index: {}]
  %s2 = inlined_call_operand.vmem [shape: f32[2,16], index: 2, kind: input, shape index: {}]
  %s3 = inlined_call_operand.vmem [shape: f32[16,2], index: 3, kind: input, shape index: {}]
  %s4 = inlined_call_operand.vmem [shape: f32[2,2,32], index: 4, kind: input, shape index: {}]
  %s5 = inlined_call_operand.vmem [shape: f32[20,16], index: 5, kind: input, shape index: {}]
  %s6 = inlined_call_operand.vmem [shape: f32[32,10], index: 6, kind: input, shape index: {}]
  %s7 = inlined_call_operand.vmem [shape: f32[32,10], index: 7, kind: input, shape index: {}]
  %s8 = inlined_call_operand.vmem [shape: f32[1,10], index: 8, kind: input, shape index: {}]
  %s9 = inlined_call_operand.vmem [shape: f32[3,16,32], index: 9, kind: input, shape index: {}]
  %s10 = inlined_call_operand.hbm [shape: f32[3,32,32], index: 10, kind: input, shape index: {}]
  %s11 = inlined_call_operand.hbm [shape: f32[3,32,32], index: 11, kind: input, shape index: {}]
  %s12 = inlined_call_operand.vmem [shape: f32[3,1,32], index: 12, kind: input, shape index: {}]
  %s13 = inlined_call_operand.vmem [shape: f32[3,1,32], index: 13, kind: input, shape index: {}]
  %s14 = inlined_call_operand.hbm [shape: f32[3,32,32], index: 14, kind: input, shape index: {}]
  %s15 = inlined_call_operand.hbm [shape: f32[3,32,32], index: 15, kind: input, shape index: {}]
  %s16 = inlined_call_operand.vmem [shape: f32[3,1,32], index: 16, kind: input, shape index: {}]
  %s17 = inlined_call_operand.vmem [shape: f32[3,1,32], index: 17, kind: input, shape index: {}]
  %s18 = inlined_call_operand.vmem [shape: f32[32,20], index: 18, kind: input, shape index: {}]
  %s19 = inlined_call_operand.vmem [shape: f32[1,20], index: 19, kind: input, shape index: {}]
  %s20 = inlined_call_operand.hbm [shape: f32[2,20], index: 20, kind: output, shape index: {0}]
  %s21 = inlined_call_operand.hbm [shape: f32[2,2,32], index: 21, kind: output, shape index: {1}]
  %22 = xla_tuple %s20, %s21
  %s23 = sld [smem:[#allocation0]]
  $region170: #{tpu_custom_call.1} parent=0
    _
  %s25 = ssub.s32 1, %s23
  %s26 = scalar_select 0, %s25, %s23
  %s28 = sshll.u32 %s0, 4
  %s29 = int_to_ptr.vmem [resolvable:$true] %s28
  %31 = dma.vmem_to_smem %s29, 16, [#allocation6], [#allocation5]
  %33 = dma.done [#allocation5], 16
  %34 = sfence
  $region1: #{tpu_custom_call.1} parent=0
    #allocation7 [shape = 'u8[49152]{0}', space=vmem, size = 0xc000, scoped, tag = 'input window, operand 10, single buffered']
    #allocation8 [shape = 's32[1]{0}', space=sflag, size = 0x4, scoped, tag = 'scoped memory for tpu_custom_call.1']
    #allocation9 [shape = 's32[1]{0}', space=sflag, size = 0x4, scoped, tag = 'scoped memory for tpu_custom_call.1']
    #allocation10 [shape = 'u8[49152]{0}', space=vmem, size = 0xc000, scoped, tag = 'input window, operand 11, single buffered']
    #allocation11 [shape = 's32[1]{0}', space=sflag, size = 0x4, scoped, tag = 'scoped memory for tpu_custom_call.1']
    #allocation12 [shape = 'u8[49152]{0}', space=vmem, size = 0xc000, scoped, tag = 'input window, operand 14, single buffered']
    #allocation13 [shape = 'u8[49152]{0}', space=vmem, size = 0xc000, scoped, tag = 'input window, operand 15, single buffered']
    #allocation14 [shape = 's32[1]{0}', space=sflag, size = 0x4, scoped, tag = 'scoped memory for tpu_custom_call.1']
    #allocation15 [shape = 'u8[1024]{0}', space=vmem, size = 0x400, scoped, tag = 'output window, operand 0, single buffered']
    #allocation16 [shape = 'u8[2048]{0}', space=vmem, size = 0x800, scoped, tag = 'output window, operand 1, single buffered']
    #allocation17 [shape = 's32[1]{0}', space=sflag, size = 0x4, scoped, tag = 'scoped memory for tpu_custom_call.1']
    %35 = vsyncpa [#allocation8], 0
    %36 = vsyncpa [#allocation11], 0
    %37 = vsyncpa [#allocation14], 0
    %38 = vsyncpa [#allocation9], 0
    %39 = vsyncpa [#allocation17], 0
    // Predicated region
    $region2: #{tpu_custom_call.1} parent=1 // pred_check
      _
    $region3: #{tpu_custom_call.1} parent=1 // pred_check_branch
      %41 = sbr.rel (0) target = $region5
    $region4: #{tpu_custom_call.1} parent=1 // pred_region
      _
    $region5: #{tpu_custom_call.1} parent=1 // pred_fallthru
      _
    // Predicated region
    $region6: #{tpu_custom_call.1} parent=1 // pred_check
      _
    $region7: #{tpu_custom_call.1} parent=1 // pred_check_branch
      %43 = sbr.rel (0) target = $region9
    $region8: #{tpu_custom_call.1} parent=1 // pred_region
      _
    $region9: #{tpu_custom_call.1} parent=1 // pred_fallthru
      _
    // Predicated region
    $region10: #{tpu_custom_call.1} parent=1 // pred_check
      _
    $region11: #{tpu_custom_call.1} parent=1 // pred_check_branch
      %45 = sbr.rel (0) target = $region13
    $region12: #{tpu_custom_call.1} parent=1 // pred_region
      _
    $region13: #{tpu_custom_call.1} parent=1 // pred_fallthru
      _
    // Predicated region
    $region14: #{tpu_custom_call.1} parent=1 // pred_check
      _
    $region15: #{tpu_custom_call.1} parent=1 // pred_check_branch
      %47 = sbr.rel (0) target = $region17
    $region16: #{tpu_custom_call.1} parent=1 // pred_region
      _
    $region17: #{tpu_custom_call.1} parent=1 // pred_fallthru
      _
    // Predicated region
    $region18: #{tpu_custom_call.1} parent=1 // pred_check
      _
    $region19: #{tpu_custom_call.1} parent=1 // pred_check_branch
      %49 = sbr.rel (0) target = $region21
    $region20: #{tpu_custom_call.1} parent=1 // pred_region
      _
    $region21: #{tpu_custom_call.1} parent=1 // pred_fallthru
      _
    // Predicated region
    $region22: #{tpu_custom_call.1} parent=1 // pred_check
      _
    $region23: #{tpu_custom_call.1} parent=1 // pred_check_branch
      %51 = sbr.rel (0) target = $region25
    $region24: #{tpu_custom_call.1} parent=1 // pred_region
      _
    $region25: #{tpu_custom_call.1} parent=1 // pred_fallthru
      _
    // Predicated region
    $region26: #{tpu_custom_call.1} parent=1 // pred_check
      _
    $region27: #{tpu_custom_call.1} parent=1 // pred_check_branch
      %53 = sbr.rel (0) target = $region29
    $region28: #{tpu_custom_call.1} parent=1 // pred_region
      _
    $region29: #{tpu_custom_call.1} parent=1 // pred_fallthru
      _
    // Predicated region
    $region30: #{tpu_custom_call.1} parent=1 // pred_check
      _
    $region31: #{tpu_custom_call.1} parent=1 // pred_check_branch
      %55 = sbr.rel (0) target = $region33
    $region32: #{tpu_custom_call.1} parent=1 // pred_region
      _
    $region33: #{tpu_custom_call.1} parent=1 // pred_fallthru
      _
    // Predicated region
    $region34: #{tpu_custom_call.1} parent=1 // pred_check
      _
    $region35: #{tpu_custom_call.1} parent=1 // pred_check_branch
      %57 = sbr.rel (0) target = $region37
    $region36: #{tpu_custom_call.1} parent=1 // pred_region
      %59 = vsyncadd [#allocation8], 0
      %s60 = sshll.u32 %s10, 4
      %s61 = int_to_ptr.hbm [resolvable:$true] %s60
      %s62 = sshll.u32 [#allocation7], 4
      %s63 = int_to_ptr.vmem [resolvable:$true] %s62
      %68 = dma.hbm_to_vmem [thread:$0]  %s61, 1536, %s63, [#allocation8], 128, 128, 8
    $region37: #{tpu_custom_call.1} parent=1 // pred_fallthru
      _
    // Predicated region
    $region38: #{tpu_custom_call.1} parent=1 // pred_check
      _
    $region39: #{tpu_custom_call.1} parent=1 // pred_check_branch
      %70 = sbr.rel (0) target = $region41
    $region40: #{tpu_custom_call.1} parent=1 // pred_region
      %72 = vsyncadd [#allocation11], 0
      %s73 = sshll.u32 %s11, 4
      %s74 = int_to_ptr.hbm [resolvable:$true] %s73
      %s75 = sshll.u32 [#allocation10], 4
      %s76 = int_to_ptr.vmem [resolvable:$true] %s75
      %81 = dma.hbm_to_vmem [thread:$0]  %s74, 1536, %s76, [#allocation11], 128, 128, 8
    $region41: #{tpu_custom_call.1} parent=1 // pred_fallthru
      _
    // Predicated region
    $region42: #{tpu_custom_call.1} parent=1 // pred_check
      _
    $region43: #{tpu_custom_call.1} parent=1 // pred_check_branch
      %83 = sbr.rel (0) target = $region45
    $region44: #{tpu_custom_call.1} parent=1 // pred_region
      _
    $region45: #{tpu_custom_call.1} parent=1 // pred_fallthru
      _
    // Predicated region
    $region46: #{tpu_custom_call.1} parent=1 // pred_check
      _
    $region47: #{tpu_custom_call.1} parent=1 // pred_check_branch
      %85 = sbr.rel (0) target = $region49
    $region48: #{tpu_custom_call.1} parent=1 // pred_region
      _
    $region49: #{tpu_custom_call.1} parent=1 // pred_fallthru
      _
    // Predicated region
    $region50: #{tpu_custom_call.1} parent=1 // pred_check
      _
    $region51: #{tpu_custom_call.1} parent=1 // pred_check_branch
      %87 = sbr.rel (0) target = $region53
    $region52: #{tpu_custom_call.1} parent=1 // pred_region
      %89 = vsyncadd [#allocation11], 0
      %s90 = sshll.u32 %s14, 4
      %s91 = int_to_ptr.hbm [resolvable:$true] %s90
      %s92 = sshll.u32 [#allocation12], 4
      %s93 = int_to_ptr.vmem [resolvable:$true] %s92
      %98 = dma.hbm_to_vmem [thread:$0]  %s91, 1536, %s93, [#allocation11], 128, 128, 8
    $region53: #{tpu_custom_call.1} parent=1 // pred_fallthru
      _
    // Predicated region
    $region54: #{tpu_custom_call.1} parent=1 // pred_check
      _
    $region55: #{tpu_custom_call.1} parent=1 // pred_check_branch
      %100 = sbr.rel (0) target = $region57
    $region56: #{tpu_custom_call.1} parent=1 // pred_region
      %102 = vsyncadd [#allocation14], 0
      %s103 = sshll.u32 %s15, 4
      %s104 = int_to_ptr.hbm [resolvable:$true] %s103
      %s105 = sshll.u32 [#allocation13], 4
      %s106 = int_to_ptr.vmem [resolvable:$true] %s105
      %111 = dma.hbm_to_vmem [thread:$0]  %s104, 1536, %s106, [#allocation14], 128, 128, 8
    $region57: #{tpu_custom_call.1} parent=1 // pred_fallthru
      _
    // Predicated region
    $region58: #{tpu_custom_call.1} parent=1 // pred_check
      _
    $region59: #{tpu_custom_call.1} parent=1 // pred_check_branch
      %113 = sbr.rel (0) target = $region61
    $region60: #{tpu_custom_call.1} parent=1 // pred_region
      _
    $region61: #{tpu_custom_call.1} parent=1 // pred_fallthru
      _
    // Predicated region
    $region62: #{tpu_custom_call.1} parent=1 // pred_check
      _
    $region63: #{tpu_custom_call.1} parent=1 // pred_check_branch
      %115 = sbr.rel (0) target = $region65
    $region64: #{tpu_custom_call.1} parent=1 // pred_region
      _
    $region65: #{tpu_custom_call.1} parent=1 // pred_fallthru
      _
    // Predicated region
    $region66: #{tpu_custom_call.1} parent=1 // pred_check
      _
    $region67: #{tpu_custom_call.1} parent=1 // pred_check_branch
      %117 = sbr.rel (0) target = $region69
    $region68: #{tpu_custom_call.1} parent=1 // pred_region
      _
    $region69: #{tpu_custom_call.1} parent=1 // pred_fallthru
      _
    // Predicated region
    $region70: #{tpu_custom_call.1} parent=1 // pred_check
      _
    $region71: #{tpu_custom_call.1} parent=1 // pred_check_branch
      %119 = sbr.rel (0) target = $region73
    $region72: #{tpu_custom_call.1} parent=1 // pred_region
      _
    $region73: #{tpu_custom_call.1} parent=1 // pred_fallthru
      _
    // Predicated region
    $region74: #{tpu_custom_call.1} parent=1 // pred_check
      _
    $region75: #{tpu_custom_call.1} parent=1 // pred_check_branch
      %121 = sbr.rel (0) target = $region77
    $region76: #{tpu_custom_call.1} parent=1 // pred_region
      %123 = dma.done [#allocation8], 1536
    $region77: #{tpu_custom_call.1} parent=1 // pred_fallthru
      _
    // Predicated region
    $region78: #{tpu_custom_call.1} parent=1 // pred_check
      _
    $region79: #{tpu_custom_call.1} parent=1 // pred_check_branch
      %125 = sbr.rel (0) target = $region81
    $region80: #{tpu_custom_call.1} parent=1 // pred_region
      %127 = dma.done [#allocation11], 1536
    $region81: #{tpu_custom_call.1} parent=1 // pred_fallthru
      _
    // Predicated region
    $region82: #{tpu_custom_call.1} parent=1 // pred_check
      _
    $region83: #{tpu_custom_call.1} parent=1 // pred_check_branch
      %129 = sbr.rel (0) target = $region85
    $region84: #{tpu_custom_call.1} parent=1 // pred_region
      %131 = dma.done [#allocation11], 1536
    $region85: #{tpu_custom_call.1} parent=1 // pred_fallthru
      _
    // Predicated region
    $region86: #{tpu_custom_call.1} parent=1 // pred_check
      _
    $region87: #{tpu_custom_call.1} parent=1 // pred_check_branch
      %133 = sbr.rel (0) target = $region89
    $region88: #{tpu_custom_call.1} parent=1 // pred_region
      %135 = dma.done [#allocation14], 1536
    $region89: #{tpu_custom_call.1} parent=1 // pred_fallthru
      _
    %p136 = scmp.eq.s32.totalorder 0, 0
    // Predicated region
    $region90: #{tpu_custom_call.1} parent=1 // pred_check
      %p137 = pneg %p136
    $region91: #{tpu_custom_call.1} parent=1 // pred_check_branch
      %139 = sbr.rel (%p137) target = $region93
    $region92: #{tpu_custom_call.1} parent=1 // pred_region
      %s140 = sld [smem:[#allocation6]]
      %s141 = scalar_lea.vmem %s5, %s140
      // Predicated region
      $region94: #{tpu_custom_call.1} parent=92 // pred_check
        _
      $region95: #{tpu_custom_call.1} parent=92 // pred_check_branch
        %143 = sbr.rel target = $region97
      $region96: #{tpu_custom_call.1} parent=92 // pred_region
        // Predicated region
        $region109: #{tpu_custom_call.1} parent=96 // pred_check
          _
        $region110: #{tpu_custom_call.1} parent=96 // pred_check_branch
          %159 = sbr.rel (0) target = $region112
        $region111: #{tpu_custom_call.1} parent=96 // pred_region
          %s161 = ssub.s32 2, 1
          loop: start=0, step=1, limit=1
          $region113: #{tpu_custom_call.1} parent=111 // loop_pre_header
            _
          $region114: #{tpu_custom_call.1} parent=111 // loop_header
            %s163 = sphi 0, %s167
            %p164 = scmp.ge.s32.totalorder %s163, 1
            %s168 = sphi %s141, %s141
            %s169 = sphi [#allocation2], [#allocation2]
          $region115: #{tpu_custom_call.1} parent=111 // loop_header_branch
            %166 = sbr.rel (%p164) target = $region119
          $region116: #{tpu_custom_call.1} parent=111 // loop_body
            %v170 = vld [vmem:[%s168] sm:%s161]
            %171 = vst [vmem:[%s169] sm:%s161] %v170
          $region117: #{tpu_custom_call.1} parent=111 // loop_footer
            %s167 = sadd.s32 1, %s163
          $region118: #{tpu_custom_call.1} parent=111 // loop_footer_branch
            %162 = sbr.rel target = $region114
          $region119: #{tpu_custom_call.1} parent=111 // loop_exit
            _
        $region112: #{tpu_custom_call.1} parent=96 // pred_fallthru
          _
      $region97: #{tpu_custom_call.1} parent=92 // pred_fallthru
        _
      // Predicated region
      $region98: #{tpu_custom_call.1} parent=92 // pred_check
        _
      $region99: #{tpu_custom_call.1} parent=92 // pred_check_branch
        %145 = sbr.rel (0) target = $region101
      $region100: #{tpu_custom_call.1} parent=92 // pred_region
        %s147 = ssub.s32 2, 1
        loop: start=0, step=1, limit=1
        $region102: #{tpu_custom_call.1} parent=100 // loop_pre_header
          _
        $region103: #{tpu_custom_call.1} parent=100 // loop_header
          %s149 = sphi 0, %s153
          %p150 = scmp.ge.s32.totalorder %s149, 1
          %s154 = sphi %s141, %s141
          %s155 = sphi [#allocation2], [#allocation2]
        $region104: #{tpu_custom_call.1} parent=100 // loop_header_branch
          %152 = sbr.rel (%p150) target = $region108
        $region105: #{tpu_custom_call.1} parent=100 // loop_body
          %v156 = vld [vmem:[%s154] sm:%s147]
          %157 = vst [vmem:[%s155] sm:%s147] %v156
        $region106: #{tpu_custom_call.1} parent=100 // loop_footer
          %s153 = sadd.s32 1, %s149
        $region107: #{tpu_custom_call.1} parent=100 // loop_footer_branch
          %148 = sbr.rel target = $region103
        $region108: #{tpu_custom_call.1} parent=100 // loop_exit
          _
      $region101: #{tpu_custom_call.1} parent=92 // pred_fallthru
        _
      // Predicated region
      $region120: #{tpu_custom_call.1} parent=92 // pred_check
        _
      $region121: #{tpu_custom_call.1} parent=92 // pred_check_branch
        %174 = sbr.rel (0) target = $region123
      $region122: #{tpu_custom_call.1} parent=92 // pred_region
        %175 = vsyncadd [#allocation3], 16
      $region123: #{tpu_custom_call.1} parent=92 // pred_fallthru
        _
      %s176 = sld [smem:[#allocation6 + $0x1]]
      %s177 = scalar_lea.vmem %s5, %s176
      %s178 = scalar_lea.vmem [#allocation2], 1
      %s179 = scalar_lea.sflag [#allocation3], 1
      // Predicated region
      $region124: #{tpu_custom_call.1} parent=92 // pred_check
        _
      $region125: #{tpu_custom_call.1} parent=92 // pred_check_branch
        %181 = sbr.rel target = $region127
      $region126: #{tpu_custom_call.1} parent=92 // pred_region
        // Predicated region
        $region139: #{tpu_custom_call.1} parent=126 // pred_check
          _
        $region140: #{tpu_custom_call.1} parent=126 // pred_check_branch
          %197 = sbr.rel (0) target = $region142
        $region141: #{tpu_custom_call.1} parent=126 // pred_region
          %s199 = ssub.s32 2, 1
          loop: start=0, step=1, limit=1
          $region143: #{tpu_custom_call.1} parent=141 // loop_pre_header
            _
          $region144: #{tpu_custom_call.1} parent=141 // loop_header
            %s201 = sphi 0, %s205
            %p202 = scmp.ge.s32.totalorder %s201, 1
            %s206 = sphi %s177, %s177
            %s207 = sphi %s178, %s178
          $region145: #{tpu_custom_call.1} parent=141 // loop_header_branch
            %204 = sbr.rel (%p202) target = $region149
          $region146: #{tpu_custom_call.1} parent=141 // loop_body
            %v208 = vld [vmem:[%s206] sm:%s199]
            %209 = vst [vmem:[%s207] sm:%s199] %v208
          $region147: #{tpu_custom_call.1} parent=141 // loop_footer
            %s205 = sadd.s32 1, %s201
          $region148: #{tpu_custom_call.1} parent=141 // loop_footer_branch
            %200 = sbr.rel target = $region144
          $region149: #{tpu_custom_call.1} parent=141 // loop_exit
            _
        $region142: #{tpu_custom_call.1} parent=126 // pred_fallthru
          _
      $region127: #{tpu_custom_call.1} parent=92 // pred_fallthru
        _
      // Predicated region
      $region128: #{tpu_custom_call.1} parent=92 // pred_check
        _
      $region129: #{tpu_custom_call.1} parent=92 // pred_check_branch
        %183 = sbr.rel (0) target = $region131
      $region130: #{tpu_custom_call.1} parent=92 // pred_region
        %s185 = ssub.s32 2, 1
        loop: start=0, step=1, limit=1
        $region132: #{tpu_custom_call.1} parent=130 // loop_pre_header
          _
        $region133: #{tpu_custom_call.1} parent=130 // loop_header
          %s187 = sphi 0, %s191
          %p188 = scmp.ge.s32.totalorder %s187, 1
          %s192 = sphi %s177, %s177
          %s193 = sphi %s178, %s178
        $region134: #{tpu_custom_call.1} parent=130 // loop_header_branch
          %190 = sbr.rel (%p188) target = $region138
        $region135: #{tpu_custom_call.1} parent=130 // loop_body
          %v194 = vld [vmem:[%s192] sm:%s185]
          %195 = vst [vmem:[%s193] sm:%s185] %v194
        $region136: #{tpu_custom_call.1} parent=130 // loop_footer
          %s191 = sadd.s32 1, %s187
        $region137: #{tpu_custom_call.1} parent=130 // loop_footer_branch
          %186 = sbr.rel target = $region133
        $region138: #{tpu_custom_call.1} parent=130 // loop_exit
          _
      $region131: #{tpu_custom_call.1} parent=92 // pred_fallthru
        _
      // Predicated region
      $region150: #{tpu_custom_call.1} parent=92 // pred_check
        _
      $region151: #{tpu_custom_call.1} parent=92 // pred_check_branch
        %212 = sbr.rel (0) target = $region153
      $region152: #{tpu_custom_call.1} parent=92 // pred_region
        %213 = vsyncadd %s179, 16
      $region153: #{tpu_custom_call.1} parent=92 // pred_fallthru
        _
      %v214 = vld [vmem:[%s1] sm:$0xff]
      %v215 = vld [vmem:[%s1 + $0x8] sm:$0xff]
      %s216 = scalar_lea.vmem %s4, 2
      %v217 = vld [vmem:[%s216] sm:$0x3]
      %v218 = vld [vmem:[%s6] sm:$0xff]
      %v219 = vld [vmem:[%s6 + $0x8] sm:$0xff]
      %v220 = vld [vmem:[%s6 + $0x10] sm:$0xff]
      %v221 = vld [vmem:[%s6 + $0x18] sm:$0xff]
      %v222 = vld [vmem:[%s7] sm:$0xff]
      %v223 = vld [vmem:[%s7 + $0x8] sm:$0xff]
      %v224 = vld [vmem:[%s7 + $0x10] sm:$0xff]
      %v225 = vld [vmem:[%s7 + $0x18] sm:$0xff]
      %vm226 = vcmask 261120
      %v228 = vsel %vm226, %v217, 0
      %230 = vmatpush.msra.mxu0 0.0
      %231 = vmatpush.msra.mxu0 0.0
      %232 = vmatpush.msra.mxu0 0.0
      %233 = vmatpush.msra.mxu0 0.0
      %234 = vmatpush.msra.mxu0 0.0
      %235 = vmatpush.msra.mxu0 0.0
      %236 = vmatpush.msra.mxu0 0.0
      %237 = vmatpush.msra.mxu0 0.0
      %238 = vmatpush.msra.mxu0 0.0
      %239 = vmatpush.msra.mxu0 0.0
      %240 = vmatpush.msra.mxu0 0.0
      %241 = vmatpush.msra.mxu0 0.0
      %242 = vmatpush.msra.mxu0 %v225
      %243 = vmatpush.msra.mxu0 %v224
      %244 = vmatpush.msra.mxu0 %v223
      %245 = vmatpush.msra.mxu0 %v222
      %246 = vmatmul.f32.gmra.mxu0 %v228
      %v247 = vpop.f32.mrf.mxu0
      %v248 = vadd.f32 0.0, %v247
      %249 = vdwg.mxu0
      %v250 = vld [vmem:[%s3] sm:$0xff]
      %v251 = vld [vmem:[%s3 + $0x8] sm:$0xff]
      %vm252 = vcmask 15360
      %v254 = vsel %vm252, %v250, 0
      %v257 = vsel %vm252, %v251, 0
      %vm259 = vcmask 1041408
      %v261 = vsel %vm259, %v248, 0
      %263 = vmatpush.msra.mxu0 0.0
      %264 = vmatpush.msra.mxu0 0.0
      %265 = vmatpush.msra.mxu0 0.0
      %266 = vmatpush.msra.mxu0 0.0
      %267 = vmatpush.msra.mxu0 0.0
      %268 = vmatpush.msra.mxu0 0.0
      %269 = vmatpush.msra.mxu0 0.0
      %270 = vmatpush.msra.mxu0 0.0
      %271 = vmatpush.msra.mxu0 0.0
      %272 = vmatpush.msra.mxu0 0.0
      %273 = vmatpush.msra.mxu0 0.0
      %274 = vmatpush.msra.mxu0 0.0
      %275 = vmatpush.msra.mxu0 0.0
      %276 = vmatpush.msra.mxu0 0.0
      %277 = vmatpush.msra.mxu0 0.0
      %278 = vmatpush.msra.mxu0 %v261
      %279 = vmatmul.f32.gmra.mxu0 %v254
      %v280 = vpop.f32.mrf.mxu0
      %v281 = vadd.f32 0.0, %v280
      %282 = vmatmul.f32.gmra.mxu0 %v257
      %v283 = vpop.f32.mrf.mxu0
      %v284 = vadd.f32 0.0, %v283
      %285 = vdwg.mxu0
      %v287 = vsel %vm226, %v214, 0
      %v290 = vsel %vm226, %v215, 0
      %292 = vmatpush.msra.mxu0 0.0
      %293 = vmatpush.msra.mxu0 0.0
      %294 = vmatpush.msra.mxu0 0.0
      %295 = vmatpush.msra.mxu0 0.0
      %296 = vmatpush.msra.mxu0 0.0
      %297 = vmatpush.msra.mxu0 0.0
      %298 = vmatpush.msra.mxu0 0.0
      %299 = vmatpush.msra.mxu0 0.0
      %300 = vmatpush.msra.mxu0 0.0
      %301 = vmatpush.msra.mxu0 0.0
      %302 = vmatpush.msra.mxu0 0.0
      %303 = vmatpush.msra.mxu0 0.0
      %304 = vmatpush.msra.mxu0 %v221
      %305 = vmatpush.msra.mxu0 %v220
      %306 = vmatpush.msra.mxu0 %v219
      %307 = vmatpush.msra.mxu0 %v218
      %308 = vmatmul.f32.gmra.mxu0 %v287
      %v309 = vpop.f32.mrf.mxu0
      %v310 = vadd.f32 %v281, %v309
      %311 = vmatmul.f32.gmra.mxu0 %v290
      %v312 = vpop.f32.mrf.mxu0
      %v313 = vadd.f32 %v284, %v312
      %314 = vdwg.mxu0
      %v315 = vtanh.pop %v310
      %v316 = vtanh.pop %v313
      %v317 = vld [vmem:[%s8] sm:$0x1]
      %v319 = vperm.slane %v317, 0
      %v321 = vmul.f32 %v315, %v319
      %v322 = vmul.f32 %v316, %v319
      %vm323 = vcmask 80896
      %v324 = vsel %vm323, %v321, 0.0
      %325 = vadd.xlane.f32.xlu0 %v324
      %v326 = vpop.xlane.xlu0 %325
      %v327 = vsel %vm323, %v322, 0.0
      %328 = vadd.xlane.f32.xlu0 %v327
      %v329 = vpop.xlane.xlu0 %328
      %v330 = vmax.f32 %v326, %v329
      %v331 = vrot.slane %v330, 4
      %v332 = vmax.f32 %v330, %v331
      %v333 = vrot.slane %v332, 2
      %v334 = vmax.f32 %v332, %v333
      %v335 = vrot.slane %v334, 1
      %v336 = vmax.f32 %v334, %v335
      %s337 = vtos %v336
      %v338 = vstv %s337
      %v339 = vsub.f32 %v326, %v338
      %v340 = vsub.f32 %v329, %v338
      %v341 = vmul.f32 %v339, 1.442695
      %v342 = vpow.pop %v341
      %v343 = vmul.f32 %v340, 1.442695
      %v344 = vpow.pop %v343
      %v345 = vld [vmem:[%s2] sm:$0x3]
      %vm346 = vcmask 130048
      %v348 = vsel %vm346, %v345, 0
      %350 = vmatpush.msra.mxu0 0.0
      %351 = vmatpush.msra.mxu0 0.0
      %352 = vmatpush.msra.mxu0 0.0
      %353 = vmatpush.msra.mxu0 0.0
      %354 = vmatpush.msra.mxu0 0.0
      %355 = vmatpush.msra.mxu0 0.0
      %356 = vmatpush.msra.mxu0 0.0
      %357 = vmatpush.msra.mxu0 0.0
      %358 = vmatpush.msra.mxu0 0.0
      %359 = vmatpush.msra.mxu0 0.0
      %360 = vmatpush.msra.mxu0 0.0
      %361 = vmatpush.msra.mxu0 0.0
      %362 = vmatpush.msra.mxu0 0.0
      %363 = vmatpush.msra.mxu0 0.0
      %364 = vmatpush.msra.mxu0 %v344
      %365 = vmatpush.msra.mxu0 %v342
      %366 = vmatmul.f32.gmra.mxu0 %v348
      %v367 = vpop.f32.mrf.mxu0
      %v368 = vadd.f32 0.0, %v367
      %369 = vdwg.mxu0
      %v370 = vmul.f32 %v342, %v214
      %v371 = vmul.f32 %v344, %v215
      %372 = vmatpush.msra.mxu0 0.0
      %373 = vmatpush.msra.mxu0 0.0
      %374 = vmatpush.msra.mxu0 0.0
      %375 = vmatpush.msra.mxu0 0.0
      %376 = vmatpush.msra.mxu0 0.0
      %377 = vmatpush.msra.mxu0 0.0
      %378 = vmatpush.msra.mxu0 0.0
      %379 = vmatpush.msra.mxu0 0.0
      %380 = vmatpush.msra.mxu0 0.0
      %381 = vmatpush.msra.mxu0 0.0
      %382 = vmatpush.msra.mxu0 0.0
      %383 = vmatpush.msra.mxu0 0.0
      %384 = vmatpush.msra.mxu0 0.0
      %385 = vmatpush.msra.mxu0 0.0
      %386 = vmatpush.msra.mxu0 %v371
      %387 = vmatpush.msra.mxu0 %v370
      %388 = vmatmul.f32.gmra.mxu0 %v348
      %v389 = vpop.f32.mrf.mxu0
      %v390 = vadd.f32 0.0, %v389
      %391 = vdwg.mxu0
      %393 = vset.pattern.permute.xlu0 0
      %394 = vperm.xlu0 %393, %v368
      %v395 = vpop.permute.xlu0 %394
      %v397 = vrcp.pop %v395
      %v398 = vmul.f32 %v395, %v397
      %v399 = vsub.f32 1.0, %v398
      %v400 = vmul.f32 %v397, %v399
      %v401 = vadd.f32 %v397, %v400
      %vm402 = vweird.f32 %v395
      %vm403 = vweird.f32 %v397
      %vm404 = vmor %vm402, %vm403
      %v405 = vsel %vm404, %v397, %v401
      %v406 = vand.u32 2147483647, %v395
      %vm407 = vcmp.eq.f32.partialorder %v406, 8.507059e+37
      %v408 = vand.u32 %v395, 2147483648
      %v409 = vor.u32 1.1754944e-38, %v408
      %v410 = vsel %vm407, %v409, %v405
      %v411 = vmul.f32 %v390, %v410
      %413 = dma.done [#allocation3], 16
      %415 = dma.done %s179, 16
      %v416 = vld [vmem:[#allocation2] sm:$0x3]
      %v417 = vld [vmem:[%s4] sm:$0x3]
      %v418 = vld [vmem:[%s216] sm:$0x3]
      %v419 = vld [vmem:[%s9] sm:$0xff]
      %v420 = vld [vmem:[%s9 + $0x8] sm:$0xff]
      %v421 = vld [vmem:[#allocation7] sm:$0xff]
      %v422 = vld [vmem:[#allocation7 + $0x8] sm:$0xff]
      %v423 = vld [vmem:[#allocation7 + $0x10] sm:$0xff]
      %v424 = vld [vmem:[#allocation7 + $0x18] sm:$0xff]
      %v426 = vsel %vm226, %v411, 0
      %428 = vmatpush.msra.mxu0 0.0
      %429 = vmatpush.msra.mxu0 0.0
      %430 = vmatpush.msra.mxu0 0.0
      %431 = vmatpush.msra.mxu0 0.0
      %432 = vmatpush.msra.mxu0 0.0
      %433 = vmatpush.msra.mxu0 0.0
      %434 = vmatpush.msra.mxu0 0.0
      %435 = vmatpush.msra.mxu0 0.0
      %436 = vmatpush.msra.mxu0 0.0
      %437 = vmatpush.msra.mxu0 0.0
      %438 = vmatpush.msra.mxu0 0.0
      %439 = vmatpush.msra.mxu0 0.0
      %440 = vmatpush.msra.mxu0 %v424
      %441 = vmatpush.msra.mxu0 %v423
      %442 = vmatpush.msra.mxu0 %v422
      %443 = vmatpush.msra.mxu0 %v421
      %444 = vmatmul.f32.gmra.mxu0 %v426
      %v445 = vpop.f32.mrf.mxu0
      %v446 = vadd.f32 0.0, %v445
      %447 = vdwg.mxu0
      %v449 = vsel %vm346, %v416, 0
      %451 = vmatpush.msra.mxu0 0.0
      %452 = vmatpush.msra.mxu0 0.0
      %453 = vmatpush.msra.mxu0 0.0
      %454 = vmatpush.msra.mxu0 0.0
      %455 = vmatpush.msra.mxu0 0.0
      %456 = vmatpush.msra.mxu0 0.0
      %457 = vmatpush.msra.mxu0 0.0
      %458 = vmatpush.msra.mxu0 0.0
      %459 = vmatpush.msra.mxu0 0.0
      %460 = vmatpush.msra.mxu0 0.0
      %461 = vmatpush.msra.mxu0 0.0
      %462 = vmatpush.msra.mxu0 0.0
      %463 = vmatpush.msra.mxu0 0.0
      %464 = vmatpush.msra.mxu0 0.0
      %465 = vmatpush.msra.mxu0 %v420
      %466 = vmatpush.msra.mxu0 %v419
      %467 = vmatmul.f32.gmra.mxu0 %v449
      %v468 = vpop.f32.mrf.mxu0
      %v469 = vadd.f32 %v446, %v468
      %470 = vdwg.mxu0
      %v471 = vld [vmem:[%s12] sm:$0x1]
      %v473 = vperm.slane %v471, 0
      %v475 = vadd.f32 %v469, %v473
      %v476 = vld [vmem:[#allocation10] sm:$0xff]
      %v477 = vld [vmem:[#allocation10 + $0x8] sm:$0xff]
      %v478 = vld [vmem:[#allocation10 + $0x10] sm:$0xff]
      %v479 = vld [vmem:[#allocation10 + $0x18] sm:$0xff]
      %v480 = vld [vmem:[%s13] sm:$0x1]
      %v482 = vperm.slane %v480, 0
      %v485 = vsel %vm226, %v417, 0
      %487 = vmatpush.msra.mxu0 0.0
      %488 = vmatpush.msra.mxu0 0.0
      %489 = vmatpush.msra.mxu0 0.0
      %490 = vmatpush.msra.mxu0 0.0
      %491 = vmatpush.msra.mxu0 0.0
      %492 = vmatpush.msra.mxu0 0.0
      %493 = vmatpush.msra.mxu0 0.0
      %494 = vmatpush.msra.mxu0 0.0
      %495 = vmatpush.msra.mxu0 0.0
      %496 = vmatpush.msra.mxu0 0.0
      %497 = vmatpush.msra.mxu0 0.0
      %498 = vmatpush.msra.mxu0 0.0
      %499 = vmatpush.msra.mxu0 %v479
      %500 = vmatpush.msra.mxu0 %v478
      %501 = vmatpush.msra.mxu0 %v477
      %502 = vmatpush.msra.mxu0 %v476
      %503 = vmatmul.f32.gmra.mxu0 %v485
      %v504 = vpop.f32.mrf.mxu0
      %v505 = vadd.f32 %v482, %v504
      %506 = vdwg.mxu0
      %v507 = vadd.f32 %v475, %v505
      %v508 = vxor.u32 %v507, 2147483648
      %v509 = vmul.f32 %v508, 1.442695
      %v510 = vpow.pop %v509
      %v511 = vadd.f32 %v510, 1.0
      %v512 = vrcp.pop %v511
      %v513 = vmul.f32 %v511, %v512
      %v514 = vsub.f32 1.0, %v513
      %v515 = vmul.f32 %v512, %v514
      %v516 = vadd.f32 %v512, %v515
      %vm517 = vweird.f32 %v511
      %vm518 = vweird.f32 %v512
      %vm519 = vmor %vm517, %vm518
      %v520 = vsel %vm519, %v512, %v516
      %v521 = vand.u32 2147483647, %v511
      %vm522 = vcmp.eq.f32.partialorder %v521, 8.507059e+37
      %v523 = vand.u32 %v511, 2147483648
      %v524 = vor.u32 1.1754944e-38, %v523
      %v525 = vsel %vm522, %v524, %v520
      %v526 = vmul.f32 1.0, %v525
      %s527 = scalar_lea.vmem %s9, 16
      %v528 = vld [vmem:[%s527] sm:$0xff]
      %v529 = vld [vmem:[%s527 + $0x8] sm:$0xff]
      %s530 = scalar_lea.vmem [#allocation7], 32
      %v531 = vld [vmem:[%s530] sm:$0xff]
      %v532 = vld [vmem:[%s530 + $0x8] sm:$0xff]
      %v533 = vld [vmem:[%s530 + $0x10] sm:$0xff]
      %v534 = vld [vmem:[%s530 + $0x18] sm:$0xff]
      %535 = vmatpush.msra.mxu0 0.0
      %536 = vmatpush.msra.mxu0 0.0
      %537 = vmatpush.msra.mxu0 0.0
      %538 = vmatpush.msra.mxu0 0.0
      %539 = vmatpush.msra.mxu0 0.0
      %540 = vmatpush.msra.mxu0 0.0
      %541 = vmatpush.msra.mxu0 0.0
      %542 = vmatpush.msra.mxu0 0.0
      %543 = vmatpush.msra.mxu0 0.0
      %544 = vmatpush.msra.mxu0 0.0
      %545 = vmatpush.msra.mxu0 0.0
      %546 = vmatpush.msra.mxu0 0.0
      %547 = vmatpush.msra.mxu0 %v534
      %548 = vmatpush.msra.mxu0 %v533
      %549 = vmatpush.msra.mxu0 %v532
      %550 = vmatpush.msra.mxu0 %v531
      %551 = vmatmul.f32.gmra.mxu0 %v426
      %v552 = vpop.f32.mrf.mxu0
      %v553 = vadd.f32 0.0, %v552
      %554 = vdwg.mxu0
      %555 = vmatpush.msra.mxu0 0.0
      %556 = vmatpush.msra.mxu0 0.0
      %557 = vmatpush.msra.mxu0 0.0
      %558 = vmatpush.msra.mxu0 0.0
      %559 = vmatpush.msra.mxu0 0.0
      %560 = vmatpush.msra.mxu0 0.0
      %561 = vmatpush.msra.mxu0 0.0
      %562 = vmatpush.msra.mxu0 0.0
      %563 = vmatpush.msra.mxu0 0.0
      %564 = vmatpush.msra.mxu0 0.0
      %565 = vmatpush.msra.mxu0 0.0
      %566 = vmatpush.msra.mxu0 0.0
      %567 = vmatpush.msra.mxu0 0.0
      %568 = vmatpush.msra.mxu0 0.0
      %569 = vmatpush.msra.mxu0 %v529
      %570 = vmatpush.msra.mxu0 %v528
      %571 = vmatmul.f32.gmra.mxu0 %v449
      %v572 = vpop.f32.mrf.mxu0
      %v573 = vadd.f32 %v553, %v572
      %574 = vdwg.mxu0
      %s575 = scalar_lea.vmem %s12, 1
      %v576 = vld [vmem:[%s575] sm:$0x1]
      %v578 = vperm.slane %v576, 0
      %v580 = vadd.f32 %v573, %v578
      %s581 = scalar_lea.vmem [#allocation10], 32
      %v582 = vld [vmem:[%s581] sm:$0xff]
      %v583 = vld [vmem:[%s581 + $0x8] sm:$0xff]
      %v584 = vld [vmem:[%s581 + $0x10] sm:$0xff]
      %v585 = vld [vmem:[%s581 + $0x18] sm:$0xff]
      %s586 = scalar_lea.vmem %s13, 1
      %v587 = vld [vmem:[%s586] sm:$0x1]
      %v589 = vperm.slane %v587, 0
      %591 = vmatpush.msra.mxu0 0.0
      %592 = vmatpush.msra.mxu0 0.0
      %593 = vmatpush.msra.mxu0 0.0
      %594 = vmatpush.msra.mxu0 0.0
      %595 = vmatpush.msra.mxu0 0.0
      %596 = vmatpush.msra.mxu0 0.0
      %597 = vmatpush.msra.mxu0 0.0
      %598 = vmatpush.msra.mxu0 0.0
      %599 = vmatpush.msra.mxu0 0.0
      %600 = vmatpush.msra.mxu0 0.0
      %601 = vmatpush.msra.mxu0 0.0
      %602 = vmatpush.msra.mxu0 0.0
      %603 = vmatpush.msra.mxu0 %v585
      %604 = vmatpush.msra.mxu0 %v584
      %605 = vmatpush.msra.mxu0 %v583
      %606 = vmatpush.msra.mxu0 %v582
      %607 = vmatmul.f32.gmra.mxu0 %v485
      %v608 = vpop.f32.mrf.mxu0
      %v609 = vadd.f32 %v589, %v608
      %610 = vdwg.mxu0
      %v611 = vadd.f32 %v580, %v609
      %v612 = vxor.u32 %v611, 2147483648
      %v613 = vmul.f32 %v612, 1.442695
      %v614 = vpow.pop %v613
      %v615 = vadd.f32 %v614, 1.0
      %v616 = vrcp.pop %v615
      %v617 = vmul.f32 %v615, %v616
      %v618 = vsub.f32 1.0, %v617
      %v619 = vmul.f32 %v616, %v618
      %v620 = vadd.f32 %v616, %v619
      %vm621 = vweird.f32 %v615
      %vm622 = vweird.f32 %v616
      %vm623 = vmor %vm621, %vm622
      %v624 = vsel %vm623, %v616, %v620
      %v625 = vand.u32 2147483647, %v615
      %vm626 = vcmp.eq.f32.partialorder %v625, 8.507059e+37
      %v627 = vand.u32 %v615, 2147483648
      %v628 = vor.u32 1.1754944e-38, %v627
      %v629 = vsel %vm626, %v628, %v624
      %v630 = vmul.f32 1.0, %v629
      %s631 = scalar_lea.vmem %s9, 32
      %v632 = vld [vmem:[%s631] sm:$0xff]
      %v633 = vld [vmem:[%s631 + $0x8] sm:$0xff]
      %s634 = scalar_lea.vmem [#allocation7], 64
      %v635 = vld [vmem:[%s634] sm:$0xff]
      %v636 = vld [vmem:[%s634 + $0x8] sm:$0xff]
      %v637 = vld [vmem:[%s634 + $0x10] sm:$0xff]
      %v638 = vld [vmem:[%s634 + $0x18] sm:$0xff]
      %639 = vmatpush.msra.mxu0 0.0
      %640 = vmatpush.msra.mxu0 0.0
      %641 = vmatpush.msra.mxu0 0.0
      %642 = vmatpush.msra.mxu0 0.0
      %643 = vmatpush.msra.mxu0 0.0
      %644 = vmatpush.msra.mxu0 0.0
      %645 = vmatpush.msra.mxu0 0.0
      %646 = vmatpush.msra.mxu0 0.0
      %647 = vmatpush.msra.mxu0 0.0
      %648 = vmatpush.msra.mxu0 0.0
      %649 = vmatpush.msra.mxu0 0.0
      %650 = vmatpush.msra.mxu0 0.0
      %651 = vmatpush.msra.mxu0 %v638
      %652 = vmatpush.msra.mxu0 %v637
      %653 = vmatpush.msra.mxu0 %v636
      %654 = vmatpush.msra.mxu0 %v635
      %655 = vmatmul.f32.gmra.mxu0 %v426
      %v656 = vpop.f32.mrf.mxu0
      %v657 = vadd.f32 0.0, %v656
      %658 = vdwg.mxu0
      %659 = vmatpush.msra.mxu0 0.0
      %660 = vmatpush.msra.mxu0 0.0
      %661 = vmatpush.msra.mxu0 0.0
      %662 = vmatpush.msra.mxu0 0.0
      %663 = vmatpush.msra.mxu0 0.0
      %664 = vmatpush.msra.mxu0 0.0
      %665 = vmatpush.msra.mxu0 0.0
      %666 = vmatpush.msra.mxu0 0.0
      %667 = vmatpush.msra.mxu0 0.0
      %668 = vmatpush.msra.mxu0 0.0
      %669 = vmatpush.msra.mxu0 0.0
      %670 = vmatpush.msra.mxu0 0.0
      %671 = vmatpush.msra.mxu0 0.0
      %672 = vmatpush.msra.mxu0 0.0
      %673 = vmatpush.msra.mxu0 %v633
      %674 = vmatpush.msra.mxu0 %v632
      %675 = vmatmul.f32.gmra.mxu0 %v449
      %v676 = vpop.f32.mrf.mxu0
      %v677 = vadd.f32 %v657, %v676
      %678 = vdwg.mxu0
      %s679 = scalar_lea.vmem %s12, 2
      %v680 = vld [vmem:[%s679] sm:$0x1]
      %v682 = vperm.slane %v680, 0
      %v684 = vadd.f32 %v677, %v682
      %s685 = scalar_lea.vmem [#allocation10], 64
      %v686 = vld [vmem:[%s685] sm:$0xff]
      %v687 = vld [vmem:[%s685 + $0x8] sm:$0xff]
      %v688 = vld [vmem:[%s685 + $0x10] sm:$0xff]
      %v689 = vld [vmem:[%s685 + $0x18] sm:$0xff]
      %s690 = scalar_lea.vmem %s13, 2
      %v691 = vld [vmem:[%s690] sm:$0x1]
      %v693 = vperm.slane %v691, 0
      %695 = vmatpush.msra.mxu0 0.0
      %696 = vmatpush.msra.mxu0 0.0
      %697 = vmatpush.msra.mxu0 0.0
      %698 = vmatpush.msra.mxu0 0.0
      %699 = vmatpush.msra.mxu0 0.0
      %700 = vmatpush.msra.mxu0 0.0
      %701 = vmatpush.msra.mxu0 0.0
      %702 = vmatpush.msra.mxu0 0.0
      %703 = vmatpush.msra.mxu0 0.0
      %704 = vmatpush.msra.mxu0 0.0
      %705 = vmatpush.msra.mxu0 0.0
      %706 = vmatpush.msra.mxu0 0.0
      %707 = vmatpush.msra.mxu0 %v689
      %708 = vmatpush.msra.mxu0 %v688
      %709 = vmatpush.msra.mxu0 %v687
      %710 = vmatpush.msra.mxu0 %v686
      %711 = vmatmul.f32.gmra.mxu0 %v485
      %v712 = vpop.f32.mrf.mxu0
      %v713 = vadd.f32 %v693, %v712
      %714 = vdwg.mxu0
      %v715 = vmul.f32 %v526, %v713
      %v716 = vadd.f32 %v684, %v715
      %v717 = vtanh.pop %v716
      %v718 = vsub.f32 1.0, %v630
      %v719 = vmul.f32 %v718, %v717
      %v720 = vmul.f32 %v630, %v417
      %v721 = vadd.f32 %v719, %v720
      %v722 = vld [vmem:[#allocation12] sm:$0xff]
      %v723 = vld [vmem:[#allocation12 + $0x8] sm:$0xff]
      %v724 = vld [vmem:[#allocation12 + $0x10] sm:$0xff]
      %v725 = vld [vmem:[#allocation12 + $0x18] sm:$0xff]
      %v726 = vld [vmem:[%s16] sm:$0x1]
      %v728 = vperm.slane %v726, 0
      %v731 = vsel %vm226, %v721, 0
      %733 = vmatpush.msra.mxu0 0.0
      %734 = vmatpush.msra.mxu0 0.0
      %735 = vmatpush.msra.mxu0 0.0
      %736 = vmatpush.msra.mxu0 0.0
      %737 = vmatpush.msra.mxu0 0.0
      %738 = vmatpush.msra.mxu0 0.0
      %739 = vmatpush.msra.mxu0 0.0
      %740 = vmatpush.msra.mxu0 0.0
      %741 = vmatpush.msra.mxu0 0.0
      %742 = vmatpush.msra.mxu0 0.0
      %743 = vmatpush.msra.mxu0 0.0
      %744 = vmatpush.msra.mxu0 0.0
      %745 = vmatpush.msra.mxu0 %v725
      %746 = vmatpush.msra.mxu0 %v724
      %747 = vmatpush.msra.mxu0 %v723
      %748 = vmatpush.msra.mxu0 %v722
      %749 = vmatmul.f32.gmra.mxu0 %v731
      %v750 = vpop.f32.mrf.mxu0
      %v751 = vadd.f32 %v728, %v750
      %752 = vdwg.mxu0
      %v753 = vld [vmem:[#allocation13] sm:$0xff]
      %v754 = vld [vmem:[#allocation13 + $0x8] sm:$0xff]
      %v755 = vld [vmem:[#allocation13 + $0x10] sm:$0xff]
      %v756 = vld [vmem:[#allocation13 + $0x18] sm:$0xff]
      %v757 = vld [vmem:[%s17] sm:$0x1]
      %v759 = vperm.slane %v757, 0
      %v762 = vsel %vm226, %v418, 0
      %764 = vmatpush.msra.mxu0 0.0
      %765 = vmatpush.msra.mxu0 0.0
      %766 = vmatpush.msra.mxu0 0.0
      %767 = vmatpush.msra.mxu0 0.0
      %768 = vmatpush.msra.mxu0 0.0
      %769 = vmatpush.msra.mxu0 0.0
      %770 = vmatpush.msra.mxu0 0.0
      %771 = vmatpush.msra.mxu0 0.0
      %772 = vmatpush.msra.mxu0 0.0
      %773 = vmatpush.msra.mxu0 0.0
      %774 = vmatpush.msra.mxu0 0.0
      %775 = vmatpush.msra.mxu0 0.0
      %776 = vmatpush.msra.mxu0 %v756
      %777 = vmatpush.msra.mxu0 %v755
      %778 = vmatpush.msra.mxu0 %v754
      %779 = vmatpush.msra.mxu0 %v753
      %780 = vmatmul.f32.gmra.mxu0 %v762
      %v781 = vpop.f32.mrf.mxu0
      %v782 = vadd.f32 %v759, %v781
      %783 = vdwg.mxu0
      %v784 = vadd.f32 %v751, %v782
      %v785 = vxor.u32 %v784, 2147483648
      %v786 = vmul.f32 %v785, 1.442695
      %v787 = vpow.pop %v786
      %v788 = vadd.f32 %v787, 1.0
      %v789 = vrcp.pop %v788
      %v790 = vmul.f32 %v788, %v789
      %v791 = vsub.f32 1.0, %v790
      %v792 = vmul.f32 %v789, %v791
      %v793 = vadd.f32 %v789, %v792
      %vm794 = vweird.f32 %v788
      %vm795 = vweird.f32 %v789
      %vm796 = vmor %vm794, %vm795
      %v797 = vsel %vm796, %v789, %v793
      %v798 = vand.u32 2147483647, %v788
      %vm799 = vcmp.eq.f32.partialorder %v798, 8.507059e+37
      %v800 = vand.u32 %v788, 2147483648
      %v801 = vor.u32 1.1754944e-38, %v800
      %v802 = vsel %vm799, %v801, %v797
      %v803 = vmul.f32 1.0, %v802
      %s804 = scalar_lea.vmem [#allocation12], 32
      %v805 = vld [vmem:[%s804] sm:$0xff]
      %v806 = vld [vmem:[%s804 + $0x8] sm:$0xff]
      %v807 = vld [vmem:[%s804 + $0x10] sm:$0xff]
      %v808 = vld [vmem:[%s804 + $0x18] sm:$0xff]
      %s809 = scalar_lea.vmem %s16, 1
      %v810 = vld [vmem:[%s809] sm:$0x1]
      %v812 = vperm.slane %v810, 0
      %814 = vmatpush.msra.mxu0 0.0
      %815 = vmatpush.msra.mxu0 0.0
      %816 = vmatpush.msra.mxu0 0.0
      %817 = vmatpush.msra.mxu0 0.0
      %818 = vmatpush.msra.mxu0 0.0
      %819 = vmatpush.msra.mxu0 0.0
      %820 = vmatpush.msra.mxu0 0.0
      %821 = vmatpush.msra.mxu0 0.0
      %822 = vmatpush.msra.mxu0 0.0
      %823 = vmatpush.msra.mxu0 0.0
      %824 = vmatpush.msra.mxu0 0.0
      %825 = vmatpush.msra.mxu0 0.0
      %826 = vmatpush.msra.mxu0 %v808
      %827 = vmatpush.msra.mxu0 %v807
      %828 = vmatpush.msra.mxu0 %v806
      %829 = vmatpush.msra.mxu0 %v805
      %830 = vmatmul.f32.gmra.mxu0 %v731
      %v831 = vpop.f32.mrf.mxu0
      %v832 = vadd.f32 %v812, %v831
      %833 = vdwg.mxu0
      %s834 = scalar_lea.vmem [#allocation13], 32
      %v835 = vld [vmem:[%s834] sm:$0xff]
      %v836 = vld [vmem:[%s834 + $0x8] sm:$0xff]
      %v837 = vld [vmem:[%s834 + $0x10] sm:$0xff]
      %v838 = vld [vmem:[%s834 + $0x18] sm:$0xff]
      %s839 = scalar_lea.vmem %s17, 1
      %v840 = vld [vmem:[%s839] sm:$0x1]
      %v842 = vperm.slane %v840, 0
      %844 = vmatpush.msra.mxu0 0.0
      %845 = vmatpush.msra.mxu0 0.0
      %846 = vmatpush.msra.mxu0 0.0
      %847 = vmatpush.msra.mxu0 0.0
      %848 = vmatpush.msra.mxu0 0.0
      %849 = vmatpush.msra.mxu0 0.0
      %850 = vmatpush.msra.mxu0 0.0
      %851 = vmatpush.msra.mxu0 0.0
      %852 = vmatpush.msra.mxu0 0.0
      %853 = vmatpush.msra.mxu0 0.0
      %854 = vmatpush.msra.mxu0 0.0
      %855 = vmatpush.msra.mxu0 0.0
      %856 = vmatpush.msra.mxu0 %v838
      %857 = vmatpush.msra.mxu0 %v837
      %858 = vmatpush.msra.mxu0 %v836
      %859 = vmatpush.msra.mxu0 %v835
      %860 = vmatmul.f32.gmra.mxu0 %v762
      %v861 = vpop.f32.mrf.mxu0
      %v862 = vadd.f32 %v842, %v861
      %863 = vdwg.mxu0
      %v864 = vadd.f32 %v832, %v862
      %v865 = vxor.u32 %v864, 2147483648
      %v866 = vmul.f32 %v865, 1.442695
      %v867 = vpow.pop %v866
      %v868 = vadd.f32 %v867, 1.0
      %v869 = vrcp.pop %v868
      %v870 = vmul.f32 %v868, %v869
      %v871 = vsub.f32 1.0, %v870
      %v872 = vmul.f32 %v869, %v871
      %v873 = vadd.f32 %v869, %v872
      %vm874 = vweird.f32 %v868
      %vm875 = vweird.f32 %v869
      %vm876 = vmor %vm874, %vm875
      %v877 = vsel %vm876, %v869, %v873
      %v878 = vand.u32 2147483647, %v868
      %vm879 = vcmp.eq.f32.partialorder %v878, 8.507059e+37
      %v880 = vand.u32 %v868, 2147483648
      %v881 = vor.u32 1.1754944e-38, %v880
      %v882 = vsel %vm879, %v881, %v877
      %v883 = vmul.f32 1.0, %v882
      %s884 = scalar_lea.vmem [#allocation12], 64
      %v885 = vld [vmem:[%s884] sm:$0xff]
      %v886 = vld [vmem:[%s884 + $0x8] sm:$0xff]
      %v887 = vld [vmem:[%s884 + $0x10] sm:$0xff]
      %v888 = vld [vmem:[%s884 + $0x18] sm:$0xff]
      %s889 = scalar_lea.vmem %s16, 2
      %v890 = vld [vmem:[%s889] sm:$0x1]
      %v892 = vperm.slane %v890, 0
      %894 = vmatpush.msra.mxu0 0.0
      %895 = vmatpush.msra.mxu0 0.0
      %896 = vmatpush.msra.mxu0 0.0
      %897 = vmatpush.msra.mxu0 0.0
      %898 = vmatpush.msra.mxu0 0.0
      %899 = vmatpush.msra.mxu0 0.0
      %900 = vmatpush.msra.mxu0 0.0
      %901 = vmatpush.msra.mxu0 0.0
      %902 = vmatpush.msra.mxu0 0.0
      %903 = vmatpush.msra.mxu0 0.0
      %904 = vmatpush.msra.mxu0 0.0
      %905 = vmatpush.msra.mxu0 0.0
      %906 = vmatpush.msra.mxu0 %v888
      %907 = vmatpush.msra.mxu0 %v887
      %908 = vmatpush.msra.mxu0 %v886
      %909 = vmatpush.msra.mxu0 %v885
      %910 = vmatmul.f32.gmra.mxu0 %v731
      %v911 = vpop.f32.mrf.mxu0
      %v912 = vadd.f32 %v892, %v911
      %913 = vdwg.mxu0
      %s914 = scalar_lea.vmem [#allocation13], 64
      %v915 = vld [vmem:[%s914] sm:$0xff]
      %v916 = vld [vmem:[%s914 + $0x8] sm:$0xff]
      %v917 = vld [vmem:[%s914 + $0x10] sm:$0xff]
      %v918 = vld [vmem:[%s914 + $0x18] sm:$0xff]
      %s919 = scalar_lea.vmem %s17, 2
      %v920 = vld [vmem:[%s919] sm:$0x1]
      %v922 = vperm.slane %v920, 0
      %924 = vmatpush.msra.mxu0 0.0
      %925 = vmatpush.msra.mxu0 0.0
      %926 = vmatpush.msra.mxu0 0.0
      %927 = vmatpush.msra.mxu0 0.0
      %928 = vmatpush.msra.mxu0 0.0
      %929 = vmatpush.msra.mxu0 0.0
      %930 = vmatpush.msra.mxu0 0.0
      %931 = vmatpush.msra.mxu0 0.0
      %932 = vmatpush.msra.mxu0 0.0
      %933 = vmatpush.msra.mxu0 0.0
      %934 = vmatpush.msra.mxu0 0.0
      %935 = vmatpush.msra.mxu0 0.0
      %936 = vmatpush.msra.mxu0 %v918
      %937 = vmatpush.msra.mxu0 %v917
      %938 = vmatpush.msra.mxu0 %v916
      %939 = vmatpush.msra.mxu0 %v915
      %940 = vmatmul.f32.gmra.mxu0 %v762
      %v941 = vpop.f32.mrf.mxu0
      %v942 = vadd.f32 %v922, %v941
      %943 = vdwg.mxu0
      %v944 = vmul.f32 %v803, %v942
      %v945 = vadd.f32 %v912, %v944
      %v946 = vtanh.pop %v945
      %v947 = vsub.f32 1.0, %v883
      %v948 = vmul.f32 %v947, %v946
      %v949 = vmul.f32 %v883, %v418
      %v950 = vadd.f32 %v948, %v949
      %vm951 = vcmask 254976
      %952 = vst.msk [vmem:[#allocation16] sm:$0x3] %vm951, %v721
      %s953 = scalar_lea.vmem [#allocation16], 2
      %954 = vst.msk [vmem:[%s953] sm:$0x3] %vm951, %v950
      %955 = vst.msk [vmem:[#allocation4] sm:$0x3] %vm951, %v950
    $region93: #{tpu_custom_call.1} parent=1 // pred_fallthru
      _
    %v956 = vld [vmem:[#allocation4] sm:$0x3]
    %v957 = vld [vmem:[%s18] sm:$0xff]
    %v958 = vld [vmem:[%s18 + $0x8] sm:$0xff]
    %v959 = vld [vmem:[%s18 + $0x10] sm:$0xff]
    %v960 = vld [vmem:[%s18 + $0x18] sm:$0xff]
    %v961 = vld [vmem:[%s19] sm:$0x1]
    %v963 = vperm.slane %v961, 0
    %vm965 = vcmask 261120
    %v967 = vsel %vm965, %v956, 0
    %969 = vmatpush.msra.mxu0 0.0
    %970 = vmatpush.msra.mxu0 0.0
    %971 = vmatpush.msra.mxu0 0.0
    %972 = vmatpush.msra.mxu0 0.0
    %973 = vmatpush.msra.mxu0 0.0
    %974 = vmatpush.msra.mxu0 0.0
    %975 = vmatpush.msra.mxu0 0.0
    %976 = vmatpush.msra.mxu0 0.0
    %977 = vmatpush.msra.mxu0 0.0
    %978 = vmatpush.msra.mxu0 0.0
    %979 = vmatpush.msra.mxu0 0.0
    %980 = vmatpush.msra.mxu0 0.0
    %981 = vmatpush.msra.mxu0 %v960
    %982 = vmatpush.msra.mxu0 %v959
    %983 = vmatpush.msra.mxu0 %v958
    %984 = vmatpush.msra.mxu0 %v957
    %985 = vmatmul.f32.gmra.mxu0 %v967
    %v986 = vpop.f32.mrf.mxu0
    %v987 = vadd.f32 %v963, %v986
    %988 = vdwg.mxu0
    %vm989 = vcmask 156672
    %990 = vst.msk [vmem:[#allocation15] sm:$0x3] %vm989, %v987
    // Predicated region
    $region154: #{tpu_custom_call.1} parent=1 // pred_check
      _
    $region155: #{tpu_custom_call.1} parent=1 // pred_check_branch
      %992 = sbr.rel (0) target = $region157
    $region156: #{tpu_custom_call.1} parent=1 // pred_region
      %994 = vsyncadd [#allocation9], 0
      %s996 = sshll.u32 [#allocation15], 4
      %s997 = int_to_ptr.vmem [resolvable:$true] %s996
      %s998 = sshll.u32 %s20, 4
      %s999 = int_to_ptr.hbm [resolvable:$true] %s998
      %1001 = dma.vmem_to_hbm [thread:$0]  %s997, 32, %s999, [#allocation9]
    $region157: #{tpu_custom_call.1} parent=1 // pred_fallthru
      _
    // Predicated region
    $region158: #{tpu_custom_call.1} parent=1 // pred_check
      _
    $region159: #{tpu_custom_call.1} parent=1 // pred_check_branch
      %1003 = sbr.rel (0) target = $region161
    $region160: #{tpu_custom_call.1} parent=1 // pred_region
      %1005 = vsyncadd [#allocation17], 0
      %s1006 = sshll.u32 [#allocation16], 4
      %s1007 = int_to_ptr.vmem [resolvable:$true] %s1006
      %s1008 = sshll.u32 %s21, 4
      %s1009 = int_to_ptr.hbm [resolvable:$true] %s1008
      %1014 = dma.vmem_to_hbm [thread:$0]  %s1007, 64, %s1009, [#allocation17], 32, 32, 2
    $region161: #{tpu_custom_call.1} parent=1 // pred_fallthru
      _
    // Predicated region
    $region162: #{tpu_custom_call.1} parent=1 // pred_check
      _
    $region163: #{tpu_custom_call.1} parent=1 // pred_check_branch
      %1016 = sbr.rel (0) target = $region165
    $region164: #{tpu_custom_call.1} parent=1 // pred_region
      %1018 = dma.done [#allocation9], 32
    $region165: #{tpu_custom_call.1} parent=1 // pred_fallthru
      _
    // Predicated region
    $region166: #{tpu_custom_call.1} parent=1 // pred_check
      _
    $region167: #{tpu_custom_call.1} parent=1 // pred_check_branch
      %1020 = sbr.rel (0) target = $region169
    $region168: #{tpu_custom_call.1} parent=1 // pred_region
      %1022 = dma.done [#allocation17], 64
    $region169: #{tpu_custom_call.1} parent=1 // pred_fallthru
      _
    %1023 = vsyncpa [#allocation8], 1
    %1024 = vsyncpa [#allocation11], 1
    %1025 = vsyncpa [#allocation14], 1
    %1026 = vsyncpa [#allocation9], 1
    %1027 = vsyncpa [#allocation17], 1
  %1028 = vsyncmov [#allocation3]
  %s1029 = vpop.sfrf %1028
  %p1030 = scmp.eq.s32.totalorder %s1029, 0
  %p1031 = pneg %p1030
  %1033 = shalt.err (%p1031)
  %s1034 = scalar_lea.sflag [#allocation3], 1
  %1035 = vsyncmov %s1034
  %s1036 = vpop.sfrf %1035
  %p1037 = scmp.eq.s32.totalorder %s1036, 0
  %p1038 = pneg %p1037
  %1040 = shalt.err (%p1038)

</llo_original>
